<compile_context>
chip_gen: v6e
topology: v6e:2x2x1
jax: 0.10.0
libtpu: 0.0.40
codegen_flags: <defaults>
</compile_context>

<pallas_src>
import functools

import jax
import jax.numpy as jnp
import numpy as np
from jax import lax
from jax.experimental import pallas as pl
from jax.experimental.pallas import tpu as pltpu


def _self_attn_flash_kernel(xq_ref, xkv_ref, wq_ref, bq_ref, wkv_ref, bkv_ref,
                            wproj_ref, bproj_ref, o_ref,
                            q_scr, m_scr, l_scr, acc_scr,
                            *, heads, dim_head):
    """One (batch, q-tile, kv-tile) grid step, channel-on-sublane / sequence-on-lane.

    xq_ref:(1,C,tq) bf16  xkv_ref:(1,C,tk) bf16
    wq_ref:(C,C) bf16 (scale folded, fp32-folded)   bq_ref:(C,1) f32
    wkv_ref:(2C,C) bf16                              bkv_ref:(2C,1) f32
    wproj_ref:(C,C) bf16                             bproj_ref:(C,1) f32
    o_ref:(1,C,tq)
    scratch: q_scr:(C,tq) f32, m_scr/l_scr:(heads,tq) f32, acc_scr:(C,tq) f32
    """
    C = heads * dim_head
    ki = pl.program_id(2)
    nk = pl.num_programs(2)

    @pl.when(ki == 0)
    def _init():
        xq = xq_ref[0]                                                    # (C, tq) bf16
        q = jnp.dot(wq_ref[...], xq, preferred_element_type=jnp.float32) + bq_ref[...]
        q_scr[...] = q                                                    # f32, pre-scaled
        m_scr[...] = jnp.full_like(m_scr, -jnp.inf)
        l_scr[...] = jnp.zeros_like(l_scr)
        acc_scr[...] = jnp.zeros_like(acc_scr)

    # K/V projection for this kv tile (recomputed once per q tile; extra cost is a fixed
    # C/(2*tq) fraction of the attention FLOPs and keeps the kernel single HBM pass).
    xkv = xkv_ref[0]                                                      # (C, tk) bf16
    kv = jnp.dot(wkv_ref[...], xkv, preferred_element_type=jnp.float32) + bkv_ref[...]

    for h in range(heads):                                                # static unroll
        lo = h * dim_head
        hi = lo + dim_head
        # f32 sublane-aligned slices (dh multiple of 8), cast to bf16 for the MXU.
        q_h = q_scr[lo:hi, :].astype(jnp.bfloat16)                        # (dh, tq)
        k_h = kv[lo:hi, :].astype(jnp.bfloat16)                           # (dh, tk)
        v_h = kv[C + lo:C + hi, :].astype(jnp.bfloat16)                   # (dh, tk)

        # scores (tk, tq) = k_h^T q_h  (contract dh); softmax reduction over sublanes,
        # so the running stats are naturally (1, tq) and broadcast over acc rows for free.
        s = lax.dot_general(k_h, q_h,
                            dimension_numbers=(((0,), (0,)), ((), ())),
                            preferred_element_type=jnp.float32)           # (tk, tq) f32

        m_prev = m_scr[h:h + 1, :]                                        # (1, tq)
        m_new = jnp.maximum(m_prev, jnp.max(s, axis=0, keepdims=True))    # (1, tq)
        alpha = jnp.exp(m_prev - m_new)                                   # (1, tq)
        # TODO(synk): on v6e/v7x a bf16 exp path would ~double EUP throughput; kept fp32
        # so the same kernel is valid on v5e (no bf16 EUP/VPU).
        p = jnp.exp(s - m_new)                                            # (tk, tq) f32
        l_scr[h:h + 1, :] = alpha * l_scr[h:h + 1, :] + jnp.sum(p, axis=0, keepdims=True)

        pv = lax.dot_general(v_h, p.astype(jnp.bfloat16),
                             dimension_numbers=(((1,), (0,)), ((), ())),
                             preferred_element_type=jnp.float32)          # (dh, tq)
        acc_scr[lo:hi, :] = alpha * acc_scr[lo:hi, :] + pv
        m_scr[h:h + 1, :] = m_new

    @pl.when(ki == nk - 1)
    def _finalize():
        # Deferred softmax normalization (EUP reciprocal + one Newton refinement), then
        # the fused output 1x1-conv projection -> single lane-dense (C, tq) store.
        for h in range(heads):
            lo = h * dim_head
            hi = lo + dim_head
            l_h = l_scr[h:h + 1, :]
            inv = pl.reciprocal(l_h, approx=True)
            inv = inv * (2.0 - l_h * inv)                                 # Newton step
            acc_scr[lo:hi, :] = acc_scr[lo:hi, :] * inv
        o_cat = acc_scr[...].astype(jnp.bfloat16)                         # (C, tq)
        y = jnp.dot(wproj_ref[...], o_cat,
                    preferred_element_type=jnp.float32) + bproj_ref[...]
        o_ref[...] = y.astype(o_ref.dtype)[None]


def _pick_tile(S, target):
    """Largest multiple-of-128 divisor of S that is <= target, else the full extent."""
    if S <= target:
        return S
    t = (target // 128) * 128
    while t >= 128:
        if S % t == 0:
            return t
        t -= 128
    return S


def self_attention_forward(x_nchw, params, heads, *, tq_target=256, tk_target=512):
    B, C, H, W = x_nchw.shape
    S = H * W
    dh = C // heads
    scale = dh ** (-0.5)

    # NCHW -> (B, C, S) is a free reshape (no transpose); the kernel works channel-major.
    x = x_nchw.reshape(B, C, S)
    x_b16 = x.astype(jnp.bfloat16)        # halves all kernel-side activation DMA

    w_qkv = params["w_qkv"].astype(jnp.float32)    # (3C, C)  [out, in]
    b_qkv = params["b_qkv"].astype(jnp.float32)    # (3C,)
    w_proj = params["w_proj"].astype(jnp.float32)  # (C, C)
    b_proj = params["b_proj"].astype(jnp.float32)  # (C,)

    # Fold the softmax scale into the Q weight/bias in fp32, THEN downcast to bf16.
    w_q = (w_qkv[:C] * scale).astype(jnp.bfloat16)           # (C, C)
    b_q = (b_qkv[:C] * scale).reshape(C, 1)                  # (C, 1) f32
    w_kv = w_qkv[C:].astype(jnp.bfloat16)                    # (2C, C)
    b_kv = b_qkv[C:].reshape(2 * C, 1)                       # (2C, 1) f32
    w_p = w_proj.astype(jnp.bfloat16)                        # (C, C)
    b_p = b_proj.reshape(C, 1)                               # (C, 1) f32

    tq = _pick_tile(S, tq_target)
    tk = _pick_tile(S, tk_target)
    grid = (B, S // tq, S // tk)

    # Advisory cost hint for XLA scheduling around the custom call.
    flops = B * (2 * S * C * C                        # Q projection
                 + 2 * S * (2 * C) * C * (S // tq)    # K/V projection (per q tile)
                 + 4 * S * S * C                      # scores + PV over all heads
                 + 2 * S * C * C)                     # output projection
    transcendentals = B * heads * S * S
    weight_bytes = 2 * (C * C + 2 * C * C + C * C) + 4 * (4 * C)
    bytes_accessed = 2 * B * C * S * (1 + S // tq) + 4 * B * C * S + weight_bytes

    kernel = functools.partial(_self_attn_flash_kernel, heads=heads, dim_head=dh)

    y = pl.pallas_call(
        kernel,
        out_shape=jax.ShapeDtypeStruct((B, C, S), x_nchw.dtype),
        grid_spec=pltpu.PrefetchScalarGridSpec(
            num_scalar_prefetch=0,
            grid=grid,
            in_specs=[
                pl.BlockSpec((1, C, tq), lambda b, qi, ki: (b, 0, qi)),    # x (queries)
                pl.BlockSpec((1, C, tk), lambda b, qi, ki: (b, 0, ki)),    # x (keys/vals)
                # TODO(synk): these weight/bias blocks have constant index maps and are
                # never re-fetched; pipeline_mode=pl.Buffered(1) would drop their second
                # VMEM buffer (matters at large C on v7x/v5e scoped-VMEM limits).
                pl.BlockSpec((C, C), lambda b, qi, ki: (0, 0)),            # w_q (scaled)
                pl.BlockSpec((C, 1), lambda b, qi, ki: (0, 0)),            # b_q (scaled)
                pl.BlockSpec((2 * C, C), lambda b, qi, ki: (0, 0)),        # w_kv
                pl.BlockSpec((2 * C, 1), lambda b, qi, ki: (0, 0)),        # b_kv
                pl.BlockSpec((C, C), lambda b, qi, ki: (0, 0)),            # w_proj
                pl.BlockSpec((C, 1), lambda b, qi, ki: (0, 0)),            # b_proj
            ],
            out_specs=pl.BlockSpec((1, C, tq), lambda b, qi, ki: (b, 0, qi)),
            scratch_shapes=[
                pltpu.VMEM((C, tq), jnp.float32),       # q_scr (pre-scaled Q)
                pltpu.VMEM((heads, tq), jnp.float32),   # m_scr (running max)
                pltpu.VMEM((heads, tq), jnp.float32),   # l_scr (running denom)
                pltpu.VMEM((C, tq), jnp.float32),       # acc_scr (unnormalized output)
            ]),
        compiler_params=pltpu.CompilerParams(
            dimension_semantics=("parallel", "parallel", "arbitrary")),
        cost_estimate=pl.CostEstimate(
            flops=flops,
            transcendentals=transcendentals,
            bytes_accessed=bytes_accessed),
    )(x_b16, x_b16, w_q, b_q, w_kv, b_kv, w_p, b_p)

    # Already in the PyTorch output layout (B, C, H*W).
    return y


def reference_forward(x_nchw, params, heads):
    """Pure-JAX fp32 reproduction of the PyTorch forward, for verification."""
    B, C, H, W = x_nchw.shape
    S = H * W
    dh = C // heads
    scale = dh ** (-0.5)
    x = x_nchw.reshape(B, C, S)
    qkv = jnp.einsum("oc,bcs->bos", params["w_qkv"], x) + params["b_qkv"][None, :, None]
    q, k, v = jnp.split(qkv, 3, axis=1)
    q = q.reshape(B, heads, dh, S).transpose(0, 1, 3, 2)
    k = k.reshape(B, heads, dh, S).transpose(0, 1, 3, 2)
    v = v.reshape(B, heads, dh, S).transpose(0, 1, 3, 2)
    attn = jnp.einsum("bhqd,bhkd->bhqk", q, k) * scale
    attn = jax.nn.softmax(attn, axis=-1)
    out = jnp.einsum("bhqk,bhkd->bhqd", attn, v)
    out = out.transpose(0, 1, 3, 2).reshape(B, C, S)
    out = jnp.einsum("oc,bcs->bos", params["w_proj"], out) + params["b_proj"][None, :, None]
    return out


if __name__ == "__main__":
    key = jax.random.PRNGKey(0)
    B, C, H, W = 2, 32, 8, 8          # attention_dim = 32
    heads = 4                          # dim_head = 8
    k1, k2, k3, k4, k5 = jax.random.split(key, 5)
    x = jax.random.normal(k1, (B, C, H, W), jnp.float32)
    params = {
        "w_qkv": jax.random.normal(k2, (3 * C, C), jnp.float32) * 0.1,
        "b_qkv": jax.random.normal(k3, (3 * C,), jnp.float32) * 0.1,
        "w_proj": jax.random.normal(k4, (C, C), jnp.float32) * 0.1,
        "b_proj": jax.random.normal(k5, (C,), jnp.float32) * 0.1,
    }

    out = self_attention_forward(x, params, heads)
    out = jax.block_until_ready(out)

    ref = reference_forward(x, params, heads)
    assert out.shape == (B, C, H * W)
    # bf16 MXU operands (per perf review) -> compare against the fp32 reference with a
    # bf16-appropriate tolerance.
    np.testing.assert_allclose(np.asarray(out), np.asarray(ref), rtol=2e-2, atol=2e-2)
    print("KERNEL_OK")
</pallas_src>

<mosaic_0001>
module attributes {stable_mosaic.version = 11 : i64} {
  func.func @_self_attn_flash_kernel(%arg0: i32, %arg1: i32, %arg2: i32, %arg3: memref<1x32x64xbf16, #tpu.memory_space<vmem>>, %arg4: memref<1x32x64xbf16, #tpu.memory_space<vmem>>, %arg5: memref<32x32xbf16, #tpu.memory_space<vmem>>, %arg6: memref<32x1xf32, #tpu.memory_space<vmem>>, %arg7: memref<64x32xbf16, #tpu.memory_space<vmem>>, %arg8: memref<64x1xf32, #tpu.memory_space<vmem>>, %arg9: memref<32x32xbf16, #tpu.memory_space<vmem>>, %arg10: memref<32x1xf32, #tpu.memory_space<vmem>>, %arg11: memref<1x32x64xf32, #tpu.memory_space<vmem>>, %arg12: memref<32x64xf32, #tpu.memory_space<vmem>>, %arg13: memref<4x64xf32, #tpu.memory_space<vmem>>, %arg14: memref<4x64xf32, #tpu.memory_space<vmem>>, %arg15: memref<32x64xf32, #tpu.memory_space<vmem>>) attributes {dimension_semantics = [#tpu.dimension_semantics<parallel>, #tpu.dimension_semantics<parallel>, #tpu.dimension_semantics<arbitrary>], iteration_bounds = array<i64: 2, 1, 1>, scalar_prefetch = 0 : i64, scratch_operands = 4 : i64, tpu.core_type = #tpu.core_type<tc>, window_params = [{transform_indices = @transform_0, window_bounds = array<i64: 1, 32, 64>}, {transform_indices = @transform_1, window_bounds = array<i64: 1, 32, 64>}, {pipeline_mode = #tpu.pipeline_mode<synchronous>, transform_indices = @transform_2, window_bounds = array<i64: 32, 32>}, {pipeline_mode = #tpu.pipeline_mode<synchronous>, transform_indices = @transform_3, window_bounds = array<i64: 32, 1>}, {pipeline_mode = #tpu.pipeline_mode<synchronous>, transform_indices = @transform_4, window_bounds = array<i64: 64, 32>}, {pipeline_mode = #tpu.pipeline_mode<synchronous>, transform_indices = @transform_5, window_bounds = array<i64: 64, 1>}, {pipeline_mode = #tpu.pipeline_mode<synchronous>, transform_indices = @transform_6, window_bounds = array<i64: 32, 32>}, {pipeline_mode = #tpu.pipeline_mode<synchronous>, transform_indices = @transform_7, window_bounds = array<i64: 32, 1>}, {transform_indices = @transform_8, window_bounds = array<i64: 1, 32, 64>}]} {
    %c0_i32 = arith.constant 0 : i32
    %0 = arith.cmpi eq, %arg2, %c0_i32 : i32
    %1 = arith.extui %0 : i1 to i32
    %c0_i32_0 = arith.constant 0 : i32
    %2 = arith.cmpi ne, %1, %c0_i32_0 : i32
    scf.if %2 {
      %c0_75 = arith.constant 0 : index
      %c0_76 = arith.constant 0 : index
      %c0_77 = arith.constant 0 : index
      %133 = vector.load %arg3[%c0_75, %c0_76, %c0_77] : memref<1x32x64xbf16, #tpu.memory_space<vmem>>, vector<1x32x64xbf16>
      %134 = vector.shape_cast %133 : vector<1x32x64xbf16> to vector<32x64xbf16>
      %c0_78 = arith.constant 0 : index
      %c0_79 = arith.constant 0 : index
      %135 = vector.load %arg5[%c0_78, %c0_79] : memref<32x32xbf16, #tpu.memory_space<vmem>>, vector<32x32xbf16>
      %cst_80 = arith.constant dense<0.000000e+00> : vector<32x64xf32>
      %136 = tpu.matmul %135, %134, %cst_80 {dimension_numbers = #tpu.dot_dimension_numbers<[1], [0], [0], [1], [0, 0, 1, 1], [], []>} : vector<32x32xbf16>, vector<32x64xbf16>, vector<32x64xf32> -> vector<32x64xf32>
      %c0_81 = arith.constant 0 : index
      %c0_82 = arith.constant 0 : index
      %137 = vector.load %arg6[%c0_81, %c0_82] : memref<32x1xf32, #tpu.memory_space<vmem>>, vector<32x1xf32>
      %138 = vector.broadcast %137 : vector<32x1xf32> to vector<32x64xf32>
      %139 = arith.addf %136, %138 : vector<32x64xf32>
      %c0_83 = arith.constant 0 : index
      %c0_84 = arith.constant 0 : index
      %140 = vector.load %arg12[%c0_83, %c0_84] : memref<32x64xf32, #tpu.memory_space<vmem>>, vector<32x64xf32>
      tpu.vector_store %arg12[%c0_83, %c0_84], %139 {strides = array<i32>} : memref<32x64xf32, #tpu.memory_space<vmem>>, vector<32x64xf32>,
      %cst_85 = arith.constant 0xFF800000 : f32
      %141 = vector.broadcast %cst_85 : f32 to vector<4x64xf32>
      %c0_86 = arith.constant 0 : index
      %c0_87 = arith.constant 0 : index
      %142 = vector.load %arg13[%c0_86, %c0_87] : memref<4x64xf32, #tpu.memory_space<vmem>>, vector<4x64xf32>
      tpu.vector_store %arg13[%c0_86, %c0_87], %141 {strides = array<i32>} : memref<4x64xf32, #tpu.memory_space<vmem>>, vector<4x64xf32>,
      %cst_88 = arith.constant 0.000000e+00 : f32
      %143 = vector.broadcast %cst_88 : f32 to vector<4x64xf32>
      %c0_89 = arith.constant 0 : index
      %c0_90 = arith.constant 0 : index
      %144 = vector.load %arg14[%c0_89, %c0_90] : memref<4x64xf32, #tpu.memory_space<vmem>>, vector<4x64xf32>
      tpu.vector_store %arg14[%c0_89, %c0_90], %143 {strides = array<i32>} : memref<4x64xf32, #tpu.memory_space<vmem>>, vector<4x64xf32>,
      %cst_91 = arith.constant 0.000000e+00 : f32
      %145 = vector.broadcast %cst_91 : f32 to vector<32x64xf32>
      %c0_92 = arith.constant 0 : index
      %c0_93 = arith.constant 0 : index
      %146 = vector.load %arg15[%c0_92, %c0_93] : memref<32x64xf32, #tpu.memory_space<vmem>>, vector<32x64xf32>
      tpu.vector_store %arg15[%c0_92, %c0_93], %145 {strides = array<i32>} : memref<32x64xf32, #tpu.memory_space<vmem>>, vector<32x64xf32>,
    } else {
    }
    %c0 = arith.constant 0 : index
    %c0_1 = arith.constant 0 : index
    %c0_2 = arith.constant 0 : index
    %3 = vector.load %arg4[%c0, %c0_1, %c0_2] : memref<1x32x64xbf16, #tpu.memory_space<vmem>>, vector<1x32x64xbf16>
    %4 = vector.shape_cast %3 : vector<1x32x64xbf16> to vector<32x64xbf16>
    %c0_3 = arith.constant 0 : index
    %c0_4 = arith.constant 0 : index
    %5 = vector.load %arg7[%c0_3, %c0_4] : memref<64x32xbf16, #tpu.memory_space<vmem>>, vector<64x32xbf16>
    %cst = arith.constant dense<0.000000e+00> : vector<64x64xf32>
    %6 = tpu.matmul %5, %4, %cst {dimension_numbers = #tpu.dot_dimension_numbers<[1], [0], [0], [1], [0, 0, 1, 1], [], []>} : vector<64x32xbf16>, vector<32x64xbf16>, vector<64x64xf32> -> vector<64x64xf32>
    %c0_5 = arith.constant 0 : index
    %c0_6 = arith.constant 0 : index
    %7 = vector.load %arg8[%c0_5, %c0_6] : memref<64x1xf32, #tpu.memory_space<vmem>>, vector<64x1xf32>
    %8 = vector.broadcast %7 : vector<64x1xf32> to vector<64x64xf32>
    %9 = arith.addf %6, %8 : vector<64x64xf32>
    %c0_7 = arith.constant 0 : index
    %c0_8 = arith.constant 0 : index
    %10 = vector.load %arg12[%c0_7, %c0_8] : memref<32x64xf32, #tpu.memory_space<vmem>>, vector<8x64xf32>
    %11 = arith.truncf %10 : vector<8x64xf32> to vector<8x64xbf16>
    %12 = vector.extract_strided_slice %9 {offsets = [0, 0], sizes = [8, 64], strides = [1, 1]} : vector<64x64xf32> to vector<8x64xf32>
    %13 = arith.truncf %12 : vector<8x64xf32> to vector<8x64xbf16>
    %14 = vector.extract_strided_slice %9 {offsets = [32, 0], sizes = [8, 64], strides = [1, 1]} : vector<64x64xf32> to vector<8x64xf32>
    %15 = arith.truncf %14 : vector<8x64xf32> to vector<8x64xbf16>
    %cst_9 = arith.constant dense<0.000000e+00> : vector<64x64xf32>
    %16 = tpu.matmul %13, %11, %cst_9 {dimension_numbers = #tpu.dot_dimension_numbers<[0], [0], [1], [1], [0, 1, 1, 1], [], []>} : vector<8x64xbf16>, vector<8x64xbf16>, vector<64x64xf32> -> vector<64x64xf32>
    %c0_10 = arith.constant 0 : index
    %c0_11 = arith.constant 0 : index
    %17 = vector.load %arg13[%c0_10, %c0_11] : memref<4x64xf32, #tpu.memory_space<vmem>>, vector<1x64xf32>
    %cst_12 = arith.constant dense<0xFF800000> : vector<64xf32>
    %18 = vector.multi_reduction <maximumf>, %16, %cst_12 [0] : vector<64x64xf32> to vector<64xf32>
    %19 = vector.shape_cast %18 : vector<64xf32> to vector<1x64xf32>
    %20 = arith.maximumf %17, %19 : vector<1x64xf32>
    %21 = arith.subf %17, %20 : vector<1x64xf32>
    %22 = math.exp %21 : vector<1x64xf32>
    %23 = vector.broadcast %20 : vector<1x64xf32> to vector<64x64xf32>
    %24 = arith.subf %16, %23 : vector<64x64xf32>
    %25 = math.exp %24 : vector<64x64xf32>
    %c0_13 = arith.constant 0 : index
    %c0_14 = arith.constant 0 : index
    %26 = vector.load %arg14[%c0_13, %c0_14] : memref<4x64xf32, #tpu.memory_space<vmem>>, vector<1x64xf32>
    %27 = arith.mulf %22, %26 : vector<1x64xf32>
    %cst_15 = arith.constant dense<0.000000e+00> : vector<64xf32>
    %28 = vector.multi_reduction <add>, %25, %cst_15 [0] : vector<64x64xf32> to vector<64xf32>
    %29 = vector.shape_cast %28 : vector<64xf32> to vector<1x64xf32>
    %30 = arith.addf %27, %29 : vector<1x64xf32>
    %c0_16 = arith.constant 0 : index
    %c0_17 = arith.constant 0 : index
    %31 = vector.load %arg14[%c0_16, %c0_17] : memref<4x64xf32, #tpu.memory_space<vmem>>, vector<1x64xf32>
    tpu.vector_store %arg14[%c0_16, %c0_17], %30 {strides = array<i32>} : memref<4x64xf32, #tpu.memory_space<vmem>>, vector<1x64xf32>,
    %32 = arith.truncf %25 : vector<64x64xf32> to vector<64x64xbf16>
    %cst_18 = arith.constant dense<0.000000e+00> : vector<8x64xf32>
    %33 = tpu.matmul %15, %32, %cst_18 {dimension_numbers = #tpu.dot_dimension_numbers<[1], [0], [0], [1], [0, 0, 1, 1], [], []>} : vector<8x64xbf16>, vector<64x64xbf16>, vector<8x64xf32> -> vector<8x64xf32>
    %c0_19 = arith.constant 0 : index
    %c0_20 = arith.constant 0 : index
    %34 = vector.load %arg15[%c0_19, %c0_20] : memref<32x64xf32, #tpu.memory_space<vmem>>, vector<8x64xf32>
    %35 = vector.broadcast %22 : vector<1x64xf32> to vector<8x64xf32>
    %36 = arith.mulf %35, %34 : vector<8x64xf32>
    %37 = arith.addf %36, %33 : vector<8x64xf32>
    %c0_21 = arith.constant 0 : index
    %c0_22 = arith.constant 0 : index
    %38 = vector.load %arg15[%c0_21, %c0_22] : memref<32x64xf32, #tpu.memory_space<vmem>>, vector<8x64xf32>
    tpu.vector_store %arg15[%c0_21, %c0_22], %37 {strides = array<i32>} : memref<32x64xf32, #tpu.memory_space<vmem>>, vector<8x64xf32>,
    %c0_23 = arith.constant 0 : index
    %c0_24 = arith.constant 0 : index
    %39 = vector.load %arg13[%c0_23, %c0_24] : memref<4x64xf32, #tpu.memory_space<vmem>>, vector<1x64xf32>
    tpu.vector_store %arg13[%c0_23, %c0_24], %20 {strides = array<i32>} : memref<4x64xf32, #tpu.memory_space<vmem>>, vector<1x64xf32>,
    %c8 = arith.constant 8 : index
    %c0_25 = arith.constant 0 : index
    %40 = vector.load %arg12[%c8, %c0_25] : memref<32x64xf32, #tpu.memory_space<vmem>>, vector<8x64xf32>
    %41 = arith.truncf %40 : vector<8x64xf32> to vector<8x64xbf16>
    %42 = vector.extract_strided_slice %9 {offsets = [8, 0], sizes = [8, 64], strides = [1, 1]} : vector<64x64xf32> to vector<8x64xf32>
    %43 = arith.truncf %42 : vector<8x64xf32> to vector<8x64xbf16>
    %44 = vector.extract_strided_slice %9 {offsets = [40, 0], sizes = [8, 64], strides = [1, 1]} : vector<64x64xf32> to vector<8x64xf32>
    %45 = arith.truncf %44 : vector<8x64xf32> to vector<8x64xbf16>
    %cst_26 = arith.constant dense<0.000000e+00> : vector<64x64xf32>
    %46 = tpu.matmul %43, %41, %cst_26 {dimension_numbers = #tpu.dot_dimension_numbers<[0], [0], [1], [1], [0, 1, 1, 1], [], []>} : vector<8x64xbf16>, vector<8x64xbf16>, vector<64x64xf32> -> vector<64x64xf32>
    %c1 = arith.constant 1 : index
    %c0_27 = arith.constant 0 : index
    %47 = vector.load %arg13[%c1, %c0_27] : memref<4x64xf32, #tpu.memory_space<vmem>>, vector<1x64xf32>
    %cst_28 = arith.constant dense<0xFF800000> : vector<64xf32>
    %48 = vector.multi_reduction <maximumf>, %46, %cst_28 [0] : vector<64x64xf32> to vector<64xf32>
    %49 = vector.shape_cast %48 : vector<64xf32> to vector<1x64xf32>
    %50 = arith.maximumf %47, %49 : vector<1x64xf32>
    %51 = arith.subf %47, %50 : vector<1x64xf32>
    %52 = math.exp %51 : vector<1x64xf32>
    %53 = vector.broadcast %50 : vector<1x64xf32> to vector<64x64xf32>
    %54 = arith.subf %46, %53 : vector<64x64xf32>
    %55 = math.exp %54 : vector<64x64xf32>
    %c1_29 = arith.constant 1 : index
    %c0_30 = arith.constant 0 : index
    %56 = vector.load %arg14[%c1_29, %c0_30] : memref<4x64xf32, #tpu.memory_space<vmem>>, vector<1x64xf32>
    %57 = arith.mulf %52, %56 : vector<1x64xf32>
    %cst_31 = arith.constant dense<0.000000e+00> : vector<64xf32>
    %58 = vector.multi_reduction <add>, %55, %cst_31 [0] : vector<64x64xf32> to vector<64xf32>
    %59 = vector.shape_cast %58 : vector<64xf32> to vector<1x64xf32>
    %60 = arith.addf %57, %59 : vector<1x64xf32>
    %c1_32 = arith.constant 1 : index
    %c0_33 = arith.constant 0 : index
    %61 = vector.load %arg14[%c1_32, %c0_33] : memref<4x64xf32, #tpu.memory_space<vmem>>, vector<1x64xf32>
    tpu.vector_store %arg14[%c1_32, %c0_33], %60 {strides = array<i32>} : memref<4x64xf32, #tpu.memory_space<vmem>>, vector<1x64xf32>,
    %62 = arith.truncf %55 : vector<64x64xf32> to vector<64x64xbf16>
    %cst_34 = arith.constant dense<0.000000e+00> : vector<8x64xf32>
    %63 = tpu.matmul %45, %62, %cst_34 {dimension_numbers = #tpu.dot_dimension_numbers<[1], [0], [0], [1], [0, 0, 1, 1], [], []>} : vector<8x64xbf16>, vector<64x64xbf16>, vector<8x64xf32> -> vector<8x64xf32>
    %c8_35 = arith.constant 8 : index
    %c0_36 = arith.constant 0 : index
    %64 = vector.load %arg15[%c8_35, %c0_36] : memref<32x64xf32, #tpu.memory_space<vmem>>, vector<8x64xf32>
    %65 = vector.broadcast %52 : vector<1x64xf32> to vector<8x64xf32>
    %66 = arith.mulf %65, %64 : vector<8x64xf32>
    %67 = arith.addf %66, %63 : vector<8x64xf32>
    %c8_37 = arith.constant 8 : index
    %c0_38 = arith.constant 0 : index
    %68 = vector.load %arg15[%c8_37, %c0_38] : memref<32x64xf32, #tpu.memory_space<vmem>>, vector<8x64xf32>
    tpu.vector_store %arg15[%c8_37, %c0_38], %67 {strides = array<i32>} : memref<32x64xf32, #tpu.memory_space<vmem>>, vector<8x64xf32>,
    %c1_39 = arith.constant 1 : index
    %c0_40 = arith.constant 0 : index
    %69 = vector.load %arg13[%c1_39, %c0_40] : memref<4x64xf32, #tpu.memory_space<vmem>>, vector<1x64xf32>
    tpu.vector_store %arg13[%c1_39, %c0_40], %50 {strides = array<i32>} : memref<4x64xf32, #tpu.memory_space<vmem>>, vector<1x64xf32>,
    %c16 = arith.constant 16 : index
    %c0_41 = arith.constant 0 : index
    %70 = vector.load %arg12[%c16, %c0_41] : memref<32x64xf32, #tpu.memory_space<vmem>>, vector<8x64xf32>
    %71 = arith.truncf %70 : vector<8x64xf32> to vector<8x64xbf16>
    %72 = vector.extract_strided_slice %9 {offsets = [16, 0], sizes = [8, 64], strides = [1, 1]} : vector<64x64xf32> to vector<8x64xf32>
    %73 = arith.truncf %72 : vector<8x64xf32> to vector<8x64xbf16>
    %74 = vector.extract_strided_slice %9 {offsets = [48, 0], sizes = [8, 64], strides = [1, 1]} : vector<64x64xf32> to vector<8x64xf32>
    %75 = arith.truncf %74 : vector<8x64xf32> to vector<8x64xbf16>
    %cst_42 = arith.constant dense<0.000000e+00> : vector<64x64xf32>
    %76 = tpu.matmul %73, %71, %cst_42 {dimension_numbers = #tpu.dot_dimension_numbers<[0], [0], [1], [1], [0, 1, 1, 1], [], []>} : vector<8x64xbf16>, vector<8x64xbf16>, vector<64x64xf32> -> vector<64x64xf32>
    %c2 = arith.constant 2 : index
    %c0_43 = arith.constant 0 : index
    %77 = vector.load %arg13[%c2, %c0_43] : memref<4x64xf32, #tpu.memory_space<vmem>>, vector<1x64xf32>
    %cst_44 = arith.constant dense<0xFF800000> : vector<64xf32>
    %78 = vector.multi_reduction <maximumf>, %76, %cst_44 [0] : vector<64x64xf32> to vector<64xf32>
    %79 = vector.shape_cast %78 : vector<64xf32> to vector<1x64xf32>
    %80 = arith.maximumf %77, %79 : vector<1x64xf32>
    %81 = arith.subf %77, %80 : vector<1x64xf32>
    %82 = math.exp %81 : vector<1x64xf32>
    %83 = vector.broadcast %80 : vector<1x64xf32> to vector<64x64xf32>
    %84 = arith.subf %76, %83 : vector<64x64xf32>
    %85 = math.exp %84 : vector<64x64xf32>
    %c2_45 = arith.constant 2 : index
    %c0_46 = arith.constant 0 : index
    %86 = vector.load %arg14[%c2_45, %c0_46] : memref<4x64xf32, #tpu.memory_space<vmem>>, vector<1x64xf32>
    %87 = arith.mulf %82, %86 : vector<1x64xf32>
    %cst_47 = arith.constant dense<0.000000e+00> : vector<64xf32>
    %88 = vector.multi_reduction <add>, %85, %cst_47 [0] : vector<64x64xf32> to vector<64xf32>
    %89 = vector.shape_cast %88 : vector<64xf32> to vector<1x64xf32>
    %90 = arith.addf %87, %89 : vector<1x64xf32>
    %c2_48 = arith.constant 2 : index
    %c0_49 = arith.constant 0 : index
    %91 = vector.load %arg14[%c2_48, %c0_49] : memref<4x64xf32, #tpu.memory_space<vmem>>, vector<1x64xf32>
    tpu.vector_store %arg14[%c2_48, %c0_49], %90 {strides = array<i32>} : memref<4x64xf32, #tpu.memory_space<vmem>>, vector<1x64xf32>,
    %92 = arith.truncf %85 : vector<64x64xf32> to vector<64x64xbf16>
    %cst_50 = arith.constant dense<0.000000e+00> : vector<8x64xf32>
    %93 = tpu.matmul %75, %92, %cst_50 {dimension_numbers = #tpu.dot_dimension_numbers<[1], [0], [0], [1], [0, 0, 1, 1], [], []>} : vector<8x64xbf16>, vector<64x64xbf16>, vector<8x64xf32> -> vector<8x64xf32>
    %c16_51 = arith.constant 16 : index
    %c0_52 = arith.constant 0 : index
    %94 = vector.load %arg15[%c16_51, %c0_52] : memref<32x64xf32, #tpu.memory_space<vmem>>, vector<8x64xf32>
    %95 = vector.broadcast %82 : vector<1x64xf32> to vector<8x64xf32>
    %96 = arith.mulf %95, %94 : vector<8x64xf32>
    %97 = arith.addf %96, %93 : vector<8x64xf32>
    %c16_53 = arith.constant 16 : index
    %c0_54 = arith.constant 0 : index
    %98 = vector.load %arg15[%c16_53, %c0_54] : memref<32x64xf32, #tpu.memory_space<vmem>>, vector<8x64xf32>
    tpu.vector_store %arg15[%c16_53, %c0_54], %97 {strides = array<i32>} : memref<32x64xf32, #tpu.memory_space<vmem>>, vector<8x64xf32>,
    %c2_55 = arith.constant 2 : index
    %c0_56 = arith.constant 0 : index
    %99 = vector.load %arg13[%c2_55, %c0_56] : memref<4x64xf32, #tpu.memory_space<vmem>>, vector<1x64xf32>
    tpu.vector_store %arg13[%c2_55, %c0_56], %80 {strides = array<i32>} : memref<4x64xf32, #tpu.memory_space<vmem>>, vector<1x64xf32>,
    %c24 = arith.constant 24 : index
    %c0_57 = arith.constant 0 : index
    %100 = vector.load %arg12[%c24, %c0_57] : memref<32x64xf32, #tpu.memory_space<vmem>>, vector<8x64xf32>
    %101 = arith.truncf %100 : vector<8x64xf32> to vector<8x64xbf16>
    %102 = vector.extract_strided_slice %9 {offsets = [24, 0], sizes = [8, 64], strides = [1, 1]} : vector<64x64xf32> to vector<8x64xf32>
    %103 = arith.truncf %102 : vector<8x64xf32> to vector<8x64xbf16>
    %104 = vector.extract_strided_slice %9 {offsets = [56, 0], sizes = [8, 64], strides = [1, 1]} : vector<64x64xf32> to vector<8x64xf32>
    %105 = arith.truncf %104 : vector<8x64xf32> to vector<8x64xbf16>
    %cst_58 = arith.constant dense<0.000000e+00> : vector<64x64xf32>
    %106 = tpu.matmul %103, %101, %cst_58 {dimension_numbers = #tpu.dot_dimension_numbers<[0], [0], [1], [1], [0, 1, 1, 1], [], []>} : vector<8x64xbf16>, vector<8x64xbf16>, vector<64x64xf32> -> vector<64x64xf32>
    %c3 = arith.constant 3 : index
    %c0_59 = arith.constant 0 : index
    %107 = vector.load %arg13[%c3, %c0_59] : memref<4x64xf32, #tpu.memory_space<vmem>>, vector<1x64xf32>
    %cst_60 = arith.constant dense<0xFF800000> : vector<64xf32>
    %108 = vector.multi_reduction <maximumf>, %106, %cst_60 [0] : vector<64x64xf32> to vector<64xf32>
    %109 = vector.shape_cast %108 : vector<64xf32> to vector<1x64xf32>
    %110 = arith.maximumf %107, %109 : vector<1x64xf32>
    %111 = arith.subf %107, %110 : vector<1x64xf32>
    %112 = math.exp %111 : vector<1x64xf32>
    %113 = vector.broadcast %110 : vector<1x64xf32> to vector<64x64xf32>
    %114 = arith.subf %106, %113 : vector<64x64xf32>
    %115 = math.exp %114 : vector<64x64xf32>
    %c3_61 = arith.constant 3 : index
    %c0_62 = arith.constant 0 : index
    %116 = vector.load %arg14[%c3_61, %c0_62] : memref<4x64xf32, #tpu.memory_space<vmem>>, vector<1x64xf32>
    %117 = arith.mulf %112, %116 : vector<1x64xf32>
    %cst_63 = arith.constant dense<0.000000e+00> : vector<64xf32>
    %118 = vector.multi_reduction <add>, %115, %cst_63 [0] : vector<64x64xf32> to vector<64xf32>
    %119 = vector.shape_cast %118 : vector<64xf32> to vector<1x64xf32>
    %120 = arith.addf %117, %119 : vector<1x64xf32>
    %c3_64 = arith.constant 3 : index
    %c0_65 = arith.constant 0 : index
    %121 = vector.load %arg14[%c3_64, %c0_65] : memref<4x64xf32, #tpu.memory_space<vmem>>, vector<1x64xf32>
    tpu.vector_store %arg14[%c3_64, %c0_65], %120 {strides = array<i32>} : memref<4x64xf32, #tpu.memory_space<vmem>>, vector<1x64xf32>,
    %122 = arith.truncf %115 : vector<64x64xf32> to vector<64x64xbf16>
    %cst_66 = arith.constant dense<0.000000e+00> : vector<8x64xf32>
    %123 = tpu.matmul %105, %122, %cst_66 {dimension_numbers = #tpu.dot_dimension_numbers<[1], [0], [0], [1], [0, 0, 1, 1], [], []>} : vector<8x64xbf16>, vector<64x64xbf16>, vector<8x64xf32> -> vector<8x64xf32>
    %c24_67 = arith.constant 24 : index
    %c0_68 = arith.constant 0 : index
    %124 = vector.load %arg15[%c24_67, %c0_68] : memref<32x64xf32, #tpu.memory_space<vmem>>, vector<8x64xf32>
    %125 = vector.broadcast %112 : vector<1x64xf32> to vector<8x64xf32>
    %126 = arith.mulf %125, %124 : vector<8x64xf32>
    %127 = arith.addf %126, %123 : vector<8x64xf32>
    %c24_69 = arith.constant 24 : index
    %c0_70 = arith.constant 0 : index
    %128 = vector.load %arg15[%c24_69, %c0_70] : memref<32x64xf32, #tpu.memory_space<vmem>>, vector<8x64xf32>
    tpu.vector_store %arg15[%c24_69, %c0_70], %127 {strides = array<i32>} : memref<32x64xf32, #tpu.memory_space<vmem>>, vector<8x64xf32>,
    %c3_71 = arith.constant 3 : index
    %c0_72 = arith.constant 0 : index
    %129 = vector.load %arg13[%c3_71, %c0_72] : memref<4x64xf32, #tpu.memory_space<vmem>>, vector<1x64xf32>
    tpu.vector_store %arg13[%c3_71, %c0_72], %110 {strides = array<i32>} : memref<4x64xf32, #tpu.memory_space<vmem>>, vector<1x64xf32>,
    %c0_i32_73 = arith.constant 0 : i32
    %130 = arith.cmpi eq, %arg2, %c0_i32_73 : i32
    %131 = arith.extui %130 : i1 to i32
    %c0_i32_74 = arith.constant 0 : i32
    %132 = arith.cmpi ne, %131, %c0_i32_74 : i32
    scf.if %132 {
      %c0_75 = arith.constant 0 : index
      %c0_76 = arith.constant 0 : index
      %133 = vector.load %arg14[%c0_75, %c0_76] : memref<4x64xf32, #tpu.memory_space<vmem>>, vector<1x64xf32>
      %134 = tpu.reciprocal %133 {approx = true} : vector<1x64xf32> -> vector<1x64xf32>
      %135 = arith.mulf %133, %134 : vector<1x64xf32>
      %cst_77 = arith.constant 2.000000e+00 : f32
      %136 = vector.broadcast %cst_77 : f32 to vector<1x64xf32>
      %137 = arith.subf %136, %135 : vector<1x64xf32>
      %138 = arith.mulf %134, %137 : vector<1x64xf32>
      %c0_78 = arith.constant 0 : index
      %c0_79 = arith.constant 0 : index
      %139 = vector.load %arg15[%c0_78, %c0_79] : memref<32x64xf32, #tpu.memory_space<vmem>>, vector<8x64xf32>
      %140 = vector.broadcast %138 : vector<1x64xf32> to vector<8x64xf32>
      %141 = arith.mulf %139, %140 : vector<8x64xf32>
      %c0_80 = arith.constant 0 : index
      %c0_81 = arith.constant 0 : index
      %142 = vector.load %arg15[%c0_80, %c0_81] : memref<32x64xf32, #tpu.memory_space<vmem>>, vector<8x64xf32>
      tpu.vector_store %arg15[%c0_80, %c0_81], %141 {strides = array<i32>} : memref<32x64xf32, #tpu.memory_space<vmem>>, vector<8x64xf32>,
      %c1_82 = arith.constant 1 : index
      %c0_83 = arith.constant 0 : index
      %143 = vector.load %arg14[%c1_82, %c0_83] : memref<4x64xf32, #tpu.memory_space<vmem>>, vector<1x64xf32>
      %144 = tpu.reciprocal %143 {approx = true} : vector<1x64xf32> -> vector<1x64xf32>
      %145 = arith.mulf %143, %144 : vector<1x64xf32>
      %cst_84 = arith.constant 2.000000e+00 : f32
      %146 = vector.broadcast %cst_84 : f32 to vector<1x64xf32>
      %147 = arith.subf %146, %145 : vector<1x64xf32>
      %148 = arith.mulf %144, %147 : vector<1x64xf32>
      %c8_85 = arith.constant 8 : index
      %c0_86 = arith.constant 0 : index
      %149 = vector.load %arg15[%c8_85, %c0_86] : memref<32x64xf32, #tpu.memory_space<vmem>>, vector<8x64xf32>
      %150 = vector.broadcast %148 : vector<1x64xf32> to vector<8x64xf32>
      %151 = arith.mulf %149, %150 : vector<8x64xf32>
      %c8_87 = arith.constant 8 : index
      %c0_88 = arith.constant 0 : index
      %152 = vector.load %arg15[%c8_87, %c0_88] : memref<32x64xf32, #tpu.memory_space<vmem>>, vector<8x64xf32>
      tpu.vector_store %arg15[%c8_87, %c0_88], %151 {strides = array<i32>} : memref<32x64xf32, #tpu.memory_space<vmem>>, vector<8x64xf32>,
      %c2_89 = arith.constant 2 : index
      %c0_90 = arith.constant 0 : index
      %153 = vector.load %arg14[%c2_89, %c0_90] : memref<4x64xf32, #tpu.memory_space<vmem>>, vector<1x64xf32>
      %154 = tpu.reciprocal %153 {approx = true} : vector<1x64xf32> -> vector<1x64xf32>
      %155 = arith.mulf %153, %154 : vector<1x64xf32>
      %cst_91 = arith.constant 2.000000e+00 : f32
      %156 = vector.broadcast %cst_91 : f32 to vector<1x64xf32>
      %157 = arith.subf %156, %155 : vector<1x64xf32>
      %158 = arith.mulf %154, %157 : vector<1x64xf32>
      %c16_92 = arith.constant 16 : index
      %c0_93 = arith.constant 0 : index
      %159 = vector.load %arg15[%c16_92, %c0_93] : memref<32x64xf32, #tpu.memory_space<vmem>>, vector<8x64xf32>
      %160 = vector.broadcast %158 : vector<1x64xf32> to vector<8x64xf32>
      %161 = arith.mulf %159, %160 : vector<8x64xf32>
      %c16_94 = arith.constant 16 : index
      %c0_95 = arith.constant 0 : index
      %162 = vector.load %arg15[%c16_94, %c0_95] : memref<32x64xf32, #tpu.memory_space<vmem>>, vector<8x64xf32>
      tpu.vector_store %arg15[%c16_94, %c0_95], %161 {strides = array<i32>} : memref<32x64xf32, #tpu.memory_space<vmem>>, vector<8x64xf32>,
      %c3_96 = arith.constant 3 : index
      %c0_97 = arith.constant 0 : index
      %163 = vector.load %arg14[%c3_96, %c0_97] : memref<4x64xf32, #tpu.memory_space<vmem>>, vector<1x64xf32>
      %164 = tpu.reciprocal %163 {approx = true} : vector<1x64xf32> -> vector<1x64xf32>
      %165 = arith.mulf %163, %164 : vector<1x64xf32>
      %cst_98 = arith.constant 2.000000e+00 : f32
      %166 = vector.broadcast %cst_98 : f32 to vector<1x64xf32>
      %167 = arith.subf %166, %165 : vector<1x64xf32>
      %168 = arith.mulf %164, %167 : vector<1x64xf32>
      %c24_99 = arith.constant 24 : index
      %c0_100 = arith.constant 0 : index
      %169 = vector.load %arg15[%c24_99, %c0_100] : memref<32x64xf32, #tpu.memory_space<vmem>>, vector<8x64xf32>
      %170 = vector.broadcast %168 : vector<1x64xf32> to vector<8x64xf32>
      %171 = arith.mulf %169, %170 : vector<8x64xf32>
      %c24_101 = arith.constant 24 : index
      %c0_102 = arith.constant 0 : index
      %172 = vector.load %arg15[%c24_101, %c0_102] : memref<32x64xf32, #tpu.memory_space<vmem>>, vector<8x64xf32>
      tpu.vector_store %arg15[%c24_101, %c0_102], %171 {strides = array<i32>} : memref<32x64xf32, #tpu.memory_space<vmem>>, vector<8x64xf32>,
      %c0_103 = arith.constant 0 : index
      %c0_104 = arith.constant 0 : index
      %173 = vector.load %arg15[%c0_103, %c0_104] : memref<32x64xf32, #tpu.memory_space<vmem>>, vector<32x64xf32>
      %174 = arith.truncf %173 : vector<32x64xf32> to vector<32x64xbf16>
      %c0_105 = arith.constant 0 : index
      %c0_106 = arith.constant 0 : index
      %175 = vector.load %arg9[%c0_105, %c0_106] : memref<32x32xbf16, #tpu.memory_space<vmem>>, vector<32x32xbf16>
      %cst_107 = arith.constant dense<0.000000e+00> : vector<32x64xf32>
      %176 = tpu.matmul %175, %174, %cst_107 {dimension_numbers = #tpu.dot_dimension_numbers<[1], [0], [0], [1], [0, 0, 1, 1], [], []>} : vector<32x32xbf16>, vector<32x64xbf16>, vector<32x64xf32> -> vector<32x64xf32>
      %c0_108 = arith.constant 0 : index
      %c0_109 = arith.constant 0 : index
      %177 = vector.load %arg10[%c0_108, %c0_109] : memref<32x1xf32, #tpu.memory_space<vmem>>, vector<32x1xf32>
      %178 = vector.broadcast %177 : vector<32x1xf32> to vector<32x64xf32>
      %179 = arith.addf %176, %178 : vector<32x64xf32>
      %180 = vector.shape_cast %179 : vector<32x64xf32> to vector<1x32x64xf32>
      %c0_110 = arith.constant 0 : index
      %c0_111 = arith.constant 0 : index
      %c0_112 = arith.constant 0 : index
      %181 = vector.load %arg11[%c0_110, %c0_111, %c0_112] : memref<1x32x64xf32, #tpu.memory_space<vmem>>, vector<1x32x64xf32>
      tpu.vector_store %arg11[%c0_110, %c0_111, %c0_112], %180 {strides = array<i32>} : memref<1x32x64xf32, #tpu.memory_space<vmem>>, vector<1x32x64xf32>,
    } else {
    }
    return
  }
  func.func @transform_0(%arg0: i32, %arg1: i32, %arg2: i32) -> (i32, i32, i32) {
    %c0_i32 = arith.constant 0 : i32
    %c0_i32_0 = arith.constant 0 : i32
    return %arg0, %c0_i32, %arg1 : i32, i32, i32
  }
  func.func @transform_1(%arg0: i32, %arg1: i32, %arg2: i32) -> (i32, i32, i32) {
    %c0_i32 = arith.constant 0 : i32
    %c0_i32_0 = arith.constant 0 : i32
    return %arg0, %c0_i32, %arg2 : i32, i32, i32
  }
  func.func @transform_2(%arg0: i32, %arg1: i32, %arg2: i32) -> (i32, i32) {
    %c0_i32 = arith.constant 0 : i32
    %c0_i32_0 = arith.constant 0 : i32
    %c0_i32_1 = arith.constant 0 : i32
    return %c0_i32, %c0_i32_0 : i32, i32
  }
  func.func @transform_3(%arg0: i32, %arg1: i32, %arg2: i32) -> (i32, i32) {
    %c0_i32 = arith.constant 0 : i32
    %c0_i32_0 = arith.constant 0 : i32
    %c0_i32_1 = arith.constant 0 : i32
    return %c0_i32, %c0_i32_0 : i32, i32
  }
  func.func @transform_4(%arg0: i32, %arg1: i32, %arg2: i32) -> (i32, i32) {
    %c0_i32 = arith.constant 0 : i32
    %c0_i32_0 = arith.constant 0 : i32
    %c0_i32_1 = arith.constant 0 : i32
    return %c0_i32, %c0_i32_0 : i32, i32
  }
  func.func @transform_5(%arg0: i32, %arg1: i32, %arg2: i32) -> (i32, i32) {
    %c0_i32 = arith.constant 0 : i32
    %c0_i32_0 = arith.constant 0 : i32
    %c0_i32_1 = arith.constant 0 : i32
    return %c0_i32, %c0_i32_0 : i32, i32
  }
  func.func @transform_6(%arg0: i32, %arg1: i32, %arg2: i32) -> (i32, i32) {
    %c0_i32 = arith.constant 0 : i32
    %c0_i32_0 = arith.constant 0 : i32
    %c0_i32_1 = arith.constant 0 : i32
    return %c0_i32, %c0_i32_0 : i32, i32
  }
  func.func @transform_7(%arg0: i32, %arg1: i32, %arg2: i32) -> (i32, i32) {
    %c0_i32 = arith.constant 0 : i32
    %c0_i32_0 = arith.constant 0 : i32
    %c0_i32_1 = arith.constant 0 : i32
    return %c0_i32, %c0_i32_0 : i32, i32
  }
  func.func @transform_8(%arg0: i32, %arg1: i32, %arg2: i32) -> (i32, i32, i32) {
    %c0_i32 = arith.constant 0 : i32
    %c0_i32_0 = arith.constant 0 : i32
    return %arg0, %c0_i32, %arg1 : i32, i32, i32
  }
}

</mosaic_0001>

<llo_original>
// kernel: tpu_custom_call.1
$region0: #{tpu_custom_call.1}
  #allocation0 [shape = 'u32[]', space=smem, size = 0x4, offset = 0x4, fixed_abs, tag = 'smem constant byte address 0x4 - core index']
  #allocation1 [shape = 'u32[144,128]{1,0:T(1,128)}', space=vmem, size = 0x12000, scoped, tag = 'internal scratch']
  #allocation2 [shape = 'f32[32,64]{1,0:T(8,128)}', space=vmem, size = 0x4000, scoped, tag = 'scratch operand']
  #allocation3 [shape = 'f32[4,64]{1,0:T(4,128)}', space=vmem, size = 0x800, scoped, tag = 'scratch operand']
  #allocation4 [shape = 'f32[4,64]{1,0:T(4,128)}', space=vmem, size = 0x800, scoped, tag = 'scratch operand']
  #allocation5 [shape = 'f32[32,64]{1,0:T(8,128)}', space=vmem, size = 0x4000, scoped, tag = 'scratch operand']
  %s0 = inlined_call_operand.vmem [shape: bf16[2,32,64], index: 0, kind: input, shape index: {}]
  %s1 = inlined_call_operand.vmem [shape: bf16[2,32,64], index: 1, kind: input, shape index: {}]
  %s2 = inlined_call_operand.vmem [shape: bf16[32,32], index: 2, kind: input, shape index: {}]
  %s3 = inlined_call_operand.vmem [shape: f32[32,1], index: 3, kind: input, shape index: {}]
  %s4 = inlined_call_operand.vmem [shape: bf16[64,32], index: 4, kind: input, shape index: {}]
  %s5 = inlined_call_operand.vmem [shape: f32[64,1], index: 5, kind: input, shape index: {}]
  %s6 = inlined_call_operand.vmem [shape: bf16[32,32], index: 6, kind: input, shape index: {}]
  %s7 = inlined_call_operand.vmem [shape: f32[32,1], index: 7, kind: input, shape index: {}]
  %s8 = inlined_call_operand.hbm [shape: f32[2,32,64], index: 8, kind: output, shape index: {}]
  %s9 = sld [smem:[#allocation0]]
  $region73: #{tpu_custom_call.1} parent=0
    _
  %s11 = ssub.s32 1, %s9
  %s12 = scalar_select 0, %s11, %s9
  $region1: #{tpu_custom_call.1} parent=0
    #allocation6 [shape = 'u8[32768]{0}', space=vmem, size = 0x8000, scoped, tag = 'output window, operand 0']
    #allocation7 [shape = 's32[2]{0}', space=sflag, size = 0x8, scoped, tag = 'scoped memory for tpu_custom_call.1']
    %13 = vsyncpa [#allocation7], 0
    %s14 = scalar_lea.sflag [#allocation7], 1
    %15 = vsyncpa %s14, 0
    loop: start=0, step=1, limit=4
    $region2: #{tpu_custom_call.1} parent=1 // loop_pre_header
      _
    $region3: #{tpu_custom_call.1} parent=1 // loop_header
      %s17 = sphi 0, %s21
      %p18 = scmp.ge.s32.totalorder %s17, 4
      %s24 = sphi 0, %s43
      %s25 = sphi 0, %s39
      %s26 = sphi 0, %s35
      %s27 = sphi 0, %s24
      %s28 = sphi 0, %s25
      %s29 = sphi 0, %s26
      %s30 = sphi 0, %s27
      %s31 = sphi 0, %s28
      %s32 = sphi 0, %s29
      %s48 = sphi 0, %s50
      %s51 = sphi 0, %s48
      %s52 = sphi 0, %s51
      %s68 = sphi 0, %s52
      %s76 = sphi 0, %s78
      %s79 = sphi 0, %s76
      %s80 = sphi 0, %s79
      %s96 = sphi 0, %s80
      %s100 = sphi 0, %s100
      %s102 = sphi 0, %s100
      %s103 = sphi 0, %s102
      %s117 = sphi 0, %s103
      %s121 = sphi 0, %s121
      %s123 = sphi 0, %s121
      %s124 = sphi 0, %s123
      %s138 = sphi 0, %s124
      %s142 = sphi 0, %s142
      %s144 = sphi 0, %s142
      %s145 = sphi 0, %s144
      %s159 = sphi 0, %s145
      %s163 = sphi 0, %s163
      %s165 = sphi 0, %s163
      %s166 = sphi 0, %s165
      %s180 = sphi 0, %s166
      %s184 = sphi 0, %s184
      %s186 = sphi 0, %s184
      %s187 = sphi 0, %s186
      %s201 = sphi 0, %s187
      %s205 = sphi 0, %s205
      %s207 = sphi 0, %s205
      %s208 = sphi 0, %s207
      %s222 = sphi 0, %s208
      %s230 = sphi 0, %s232
      %s233 = sphi 0, %s230
      %s234 = sphi 0, %s233
      %s250 = sphi 0, %s234
    $region4: #{tpu_custom_call.1} parent=1 // loop_header_branch
      %20 = sbr.rel (%p18) target = $region8
    $region5: #{tpu_custom_call.1} parent=1 // loop_body
      %s22 = ssub.s32 %s17, 1
      %s23 = ssub.s32 %s17, 2
      %s33 = sadd.s32 1, %s26
      %p34 = scmp.ge.s32.totalorder %s33, 1
      %s35 = scalar_select %p34, 0, %s33
      %s36 = sadd.s32 1, %s25
      %s37 = scalar_select %p34, %s36, %s25
      %p38 = scmp.ge.s32.totalorder %s37, 1
      %s39 = scalar_select %p38, 0, %s37
      %s40 = sadd.s32 1, %s24
      %s41 = scalar_select %p38, %s40, %s24
      %p42 = scmp.ge.s32.totalorder %s41, 2
      %s43 = scalar_select %p42, 0, %s41
      %s44 = ssub.s32 %s24, %s43
      %s45 = ssub.s32 %s25, %s39
      %s46 = sor.u32 %s44, %s45
      %p47 = scmp.eq.s32.totalorder %s46, 0
      %s49 = sadd.s32 %s48, 1
      %s50 = scalar_select %p47, %s48, %s49
      %p53 = pneg %p47
      %p54 = scmp.eq.s32.totalorder %s17, 1
      %p55 = por %p53, %p54
      %p56 = scmp.ne.s32.totalorder %s48, %s51
      %p57 = scmp.eq.s32.totalorder %s17, 0
      %p58 = por %p56, %p57
      %p59 = scmp.ne.s32.totalorder %s48, %s51
      %p60 = scmp.eq.s32.totalorder %s22, 1
      %p61 = por %p59, %p60
      %p62 = scmp.ne.s32.totalorder %s51, %s52
      %p63 = scmp.eq.s32.totalorder %s22, 0
      %p64 = por %p62, %p63
      %p65 = scmp.ne.s32.totalorder %s51, %s52
      %p66 = scmp.eq.s32.totalorder %s23, 1
      %p67 = por %p65, %p66
      %p69 = scmp.ne.s32.totalorder %s52, %s68
      %p70 = scmp.eq.s32.totalorder %s23, 0
      %p71 = por %p69, %p70
      %s72 = ssub.s32 %s24, %s43
      %s73 = ssub.s32 %s26, %s35
      %s74 = sor.u32 %s72, %s73
      %p75 = scmp.eq.s32.totalorder %s74, 0
      %s77 = sadd.s32 %s76, 1
      %s78 = scalar_select %p75, %s76, %s77
      %p81 = pneg %p75
      %p82 = scmp.eq.s32.totalorder %s17, 1
      %p83 = por %p81, %p82
      %p84 = scmp.ne.s32.totalorder %s76, %s79
      %p85 = scmp.eq.s32.totalorder %s17, 0
      %p86 = por %p84, %p85
      %p87 = scmp.ne.s32.totalorder %s76, %s79
      %p88 = scmp.eq.s32.totalorder %s22, 1
      %p89 = por %p87, %p88
      %p90 = scmp.ne.s32.totalorder %s79, %s80
      %p91 = scmp.eq.s32.totalorder %s22, 0
      %p92 = por %p90, %p91
      %p93 = scmp.ne.s32.totalorder %s79, %s80
      %p94 = scmp.eq.s32.totalorder %s23, 1
      %p95 = por %p93, %p94
      %p97 = scmp.ne.s32.totalorder %s80, %s96
      %p98 = scmp.eq.s32.totalorder %s23, 0
      %p99 = por %p97, %p98
      %s101 = sadd.s32 %s100, 1
      %p104 = scmp.eq.s32.totalorder %s17, 1
      %p105 = scmp.ne.s32.totalorder %s100, %s102
      %p106 = scmp.eq.s32.totalorder %s17, 0
      %p107 = por %p105, %p106
      %p108 = scmp.ne.s32.totalorder %s100, %s102
      %p109 = scmp.eq.s32.totalorder %s22, 1
      %p110 = por %p108, %p109
      %p111 = scmp.ne.s32.totalorder %s102, %s103
      %p112 = scmp.eq.s32.totalorder %s22, 0
      %p113 = por %p111, %p112
      %p114 = scmp.ne.s32.totalorder %s102, %s103
      %p115 = scmp.eq.s32.totalorder %s23, 1
      %p116 = por %p114, %p115
      %p118 = scmp.ne.s32.totalorder %s103, %s117
      %p119 = scmp.eq.s32.totalorder %s23, 0
      %p120 = por %p118, %p119
      %s122 = sadd.s32 %s121, 1
      %p125 = scmp.eq.s32.totalorder %s17, 1
      %p126 = scmp.ne.s32.totalorder %s121, %s123
      %p127 = scmp.eq.s32.totalorder %s17, 0
      %p128 = por %p126, %p127
      %p129 = scmp.ne.s32.totalorder %s121, %s123
      %p130 = scmp.eq.s32.totalorder %s22, 1
      %p131 = por %p129, %p130
      %p132 = scmp.ne.s32.totalorder %s123, %s124
      %p133 = scmp.eq.s32.totalorder %s22, 0
      %p134 = por %p132, %p133
      %p135 = scmp.ne.s32.totalorder %s123, %s124
      %p136 = scmp.eq.s32.totalorder %s23, 1
      %p137 = por %p135, %p136
      %p139 = scmp.ne.s32.totalorder %s124, %s138
      %p140 = scmp.eq.s32.totalorder %s23, 0
      %p141 = por %p139, %p140
      %s143 = sadd.s32 %s142, 1
      %p146 = scmp.eq.s32.totalorder %s17, 1
      %p147 = scmp.ne.s32.totalorder %s142, %s144
      %p148 = scmp.eq.s32.totalorder %s17, 0
      %p149 = por %p147, %p148
      %p150 = scmp.ne.s32.totalorder %s142, %s144
      %p151 = scmp.eq.s32.totalorder %s22, 1
      %p152 = por %p150, %p151
      %p153 = scmp.ne.s32.totalorder %s144, %s145
      %p154 = scmp.eq.s32.totalorder %s22, 0
      %p155 = por %p153, %p154
      %p156 = scmp.ne.s32.totalorder %s144, %s145
      %p157 = scmp.eq.s32.totalorder %s23, 1
      %p158 = por %p156, %p157
      %p160 = scmp.ne.s32.totalorder %s145, %s159
      %p161 = scmp.eq.s32.totalorder %s23, 0
      %p162 = por %p160, %p161
      %s164 = sadd.s32 %s163, 1
      %p167 = scmp.eq.s32.totalorder %s17, 1
      %p168 = scmp.ne.s32.totalorder %s163, %s165
      %p169 = scmp.eq.s32.totalorder %s17, 0
      %p170 = por %p168, %p169
      %p171 = scmp.ne.s32.totalorder %s163, %s165
      %p172 = scmp.eq.s32.totalorder %s22, 1
      %p173 = por %p171, %p172
      %p174 = scmp.ne.s32.totalorder %s165, %s166
      %p175 = scmp.eq.s32.totalorder %s22, 0
      %p176 = por %p174, %p175
      %p177 = scmp.ne.s32.totalorder %s165, %s166
      %p178 = scmp.eq.s32.totalorder %s23, 1
      %p179 = por %p177, %p178
      %p181 = scmp.ne.s32.totalorder %s166, %s180
      %p182 = scmp.eq.s32.totalorder %s23, 0
      %p183 = por %p181, %p182
      %s185 = sadd.s32 %s184, 1
      %p188 = scmp.eq.s32.totalorder %s17, 1
      %p189 = scmp.ne.s32.totalorder %s184, %s186
      %p190 = scmp.eq.s32.totalorder %s17, 0
      %p191 = por %p189, %p190
      %p192 = scmp.ne.s32.totalorder %s184, %s186
      %p193 = scmp.eq.s32.totalorder %s22, 1
      %p194 = por %p192, %p193
      %p195 = scmp.ne.s32.totalorder %s186, %s187
      %p196 = scmp.eq.s32.totalorder %s22, 0
      %p197 = por %p195, %p196
      %p198 = scmp.ne.s32.totalorder %s186, %s187
      %p199 = scmp.eq.s32.totalorder %s23, 1
      %p200 = por %p198, %p199
      %p202 = scmp.ne.s32.totalorder %s187, %s201
      %p203 = scmp.eq.s32.totalorder %s23, 0
      %p204 = por %p202, %p203
      %s206 = sadd.s32 %s205, 1
      %p209 = scmp.eq.s32.totalorder %s17, 1
      %p210 = scmp.ne.s32.totalorder %s205, %s207
      %p211 = scmp.eq.s32.totalorder %s17, 0
      %p212 = por %p210, %p211
      %p213 = scmp.ne.s32.totalorder %s205, %s207
      %p214 = scmp.eq.s32.totalorder %s22, 1
      %p215 = por %p213, %p214
      %p216 = scmp.ne.s32.totalorder %s207, %s208
      %p217 = scmp.eq.s32.totalorder %s22, 0
      %p218 = por %p216, %p217
      %p219 = scmp.ne.s32.totalorder %s207, %s208
      %p220 = scmp.eq.s32.totalorder %s23, 1
      %p221 = por %p219, %p220
      %p223 = scmp.ne.s32.totalorder %s208, %s222
      %p224 = scmp.eq.s32.totalorder %s23, 0
      %p225 = por %p223, %p224
      %s226 = ssub.s32 %s24, %s43
      %s227 = ssub.s32 %s25, %s39
      %s228 = sor.u32 %s226, %s227
      %p229 = scmp.eq.s32.totalorder %s228, 0
      %s231 = sadd.s32 %s230, 1
      %s232 = scalar_select %p229, %s230, %s231
      %p235 = pneg %p229
      %p236 = scmp.eq.s32.totalorder %s17, 1
      %p237 = por %p235, %p236
      %p238 = scmp.ne.s32.totalorder %s230, %s233
      %p239 = scmp.eq.s32.totalorder %s17, 0
      %p240 = por %p238, %p239
      %p241 = scmp.ne.s32.totalorder %s230, %s233
      %p242 = scmp.eq.s32.totalorder %s22, 1
      %p243 = por %p241, %p242
      %p244 = scmp.ne.s32.totalorder %s233, %s234
      %p245 = scmp.eq.s32.totalorder %s22, 0
      %p246 = por %p244, %p245
      %p247 = scmp.ne.s32.totalorder %s233, %s234
      %p248 = scmp.eq.s32.totalorder %s23, 1
      %p249 = por %p247, %p248
      %p251 = scmp.ne.s32.totalorder %s234, %s250
      %p252 = scmp.eq.s32.totalorder %s23, 0
      %p253 = por %p251, %p252
      %p254 = scmp.le.s32.totalorder 1, %s17
      %p255 = scmp.lt.s32.totalorder %s17, 3
      %p256 = pnand %p254, %p255
      %p257 = pneg %p256
      // Predicated region
      $region9: #{tpu_custom_call.1} parent=5 // pred_check
        _
      $region10: #{tpu_custom_call.1} parent=5 // pred_check_branch
        %259 = sbr.rel (%p256) target = $region12
      $region11: #{tpu_custom_call.1} parent=5 // pred_region
        %s260 = ssub.s32 %s17, 1
        // Predicated region
        $region13: #{tpu_custom_call.1} parent=11 // pred_check
          %p261 = pneg %p113
        $region14: #{tpu_custom_call.1} parent=11 // pred_check_branch
          %263 = sbr.rel (%p261) target = $region16
        $region15: #{tpu_custom_call.1} parent=11 // pred_region
          _
        $region16: #{tpu_custom_call.1} parent=11 // pred_fallthru
          _
        // Predicated region
        $region17: #{tpu_custom_call.1} parent=11 // pred_check
          %p264 = pneg %p134
        $region18: #{tpu_custom_call.1} parent=11 // pred_check_branch
          %266 = sbr.rel (%p264) target = $region20
        $region19: #{tpu_custom_call.1} parent=11 // pred_region
          _
        $region20: #{tpu_custom_call.1} parent=11 // pred_fallthru
          _
        // Predicated region
        $region21: #{tpu_custom_call.1} parent=11 // pred_check
          %p267 = pneg %p155
        $region22: #{tpu_custom_call.1} parent=11 // pred_check_branch
          %269 = sbr.rel (%p267) target = $region24
        $region23: #{tpu_custom_call.1} parent=11 // pred_region
          _
        $region24: #{tpu_custom_call.1} parent=11 // pred_fallthru
          _
        // Predicated region
        $region25: #{tpu_custom_call.1} parent=11 // pred_check
          %p270 = pneg %p176
        $region26: #{tpu_custom_call.1} parent=11 // pred_check_branch
          %272 = sbr.rel (%p270) target = $region28
        $region27: #{tpu_custom_call.1} parent=11 // pred_region
          _
        $region28: #{tpu_custom_call.1} parent=11 // pred_fallthru
          _
        // Predicated region
        $region29: #{tpu_custom_call.1} parent=11 // pred_check
          %p273 = pneg %p197
        $region30: #{tpu_custom_call.1} parent=11 // pred_check_branch
          %275 = sbr.rel (%p273) target = $region32
        $region31: #{tpu_custom_call.1} parent=11 // pred_region
          _
        $region32: #{tpu_custom_call.1} parent=11 // pred_fallthru
          _
        // Predicated region
        $region33: #{tpu_custom_call.1} parent=11 // pred_check
          %p276 = pneg %p218
        $region34: #{tpu_custom_call.1} parent=11 // pred_check_branch
          %278 = sbr.rel (%p276) target = $region36
        $region35: #{tpu_custom_call.1} parent=11 // pred_region
          _
        $region36: #{tpu_custom_call.1} parent=11 // pred_fallthru
          _
      $region12: #{tpu_custom_call.1} parent=5 // pred_fallthru
        _
      %p279 = scmp.lt.s32.totalorder %s17, 2
      // Predicated region
      $region37: #{tpu_custom_call.1} parent=5 // pred_check
        %p280 = pneg %p279
      $region38: #{tpu_custom_call.1} parent=5 // pred_check_branch
        %282 = sbr.rel (%p280) target = $region40
      $region39: #{tpu_custom_call.1} parent=5 // pred_region
        // Predicated region
        $region41: #{tpu_custom_call.1} parent=39 // pred_check
          %p283 = pneg %p58
        $region42: #{tpu_custom_call.1} parent=39 // pred_check_branch
          %285 = sbr.rel (%p283) target = $region44
        $region43: #{tpu_custom_call.1} parent=39 // pred_region
          %p286 = scmp.lt.s32.totalorder %s24, 1
          %s287 = scalar_select %p286, %s24, 1
          %p288 = scmp.lt.s32.totalorder %s25, 0
          %s289 = scalar_select %p288, %s25, 0
          %s290 = smul.addr %s287, 4
          %s291 = sadd.s32 %s289, %s290
          %s292 = smul.addr %s291, 4
          %s293 = scalar_lea.vmem %s0, %s292
        $region44: #{tpu_custom_call.1} parent=39 // pred_fallthru
          _
        // Predicated region
        $region45: #{tpu_custom_call.1} parent=39 // pred_check
          %p294 = pneg %p86
        $region46: #{tpu_custom_call.1} parent=39 // pred_check_branch
          %296 = sbr.rel (%p294) target = $region48
        $region47: #{tpu_custom_call.1} parent=39 // pred_region
          %p297 = scmp.lt.s32.totalorder %s24, 1
          %s298 = scalar_select %p297, %s24, 1
          %p299 = scmp.lt.s32.totalorder %s26, 0
          %s300 = scalar_select %p299, %s26, 0
          %s301 = smul.addr %s298, 4
          %s302 = sadd.s32 %s300, %s301
          %s303 = smul.addr %s302, 4
          %s304 = scalar_lea.vmem %s1, %s303
        $region48: #{tpu_custom_call.1} parent=39 // pred_fallthru
          _
      $region40: #{tpu_custom_call.1} parent=5 // pred_fallthru
        _
      %p305 = scmp.le.s32.totalorder 1, %s17
      %p306 = scmp.lt.s32.totalorder %s17, 3
      %p307 = pnand %p305, %p306
      %p308 = pneg %p307
      // Predicated region
      $region49: #{tpu_custom_call.1} parent=5 // pred_check
        _
      $region50: #{tpu_custom_call.1} parent=5 // pred_check_branch
        %310 = sbr.rel (%p307) target = $region52
      $region51: #{tpu_custom_call.1} parent=5 // pred_region
        %s311 = ssub.s32 %s17, 1
        %p312 = scmp.lt.s32.totalorder %s27, 1
        %s313 = scalar_select %p312, %s27, 1
        %p314 = scmp.lt.s32.totalorder %s28, 0
        %s315 = scalar_select %p314, %s28, 0
        %s316 = smul.addr %s313, 4
        %s317 = sadd.s32 %s315, %s316
        %s318 = smul.addr %s317, 4
        %s319 = scalar_lea.vmem %s0, %s318
        %p320 = pneg %p64
        %p321 = pneg %p61
        %p322 = scmp.lt.s32.totalorder %s27, 1
        %s323 = scalar_select %p322, %s27, 1
        %p324 = scmp.lt.s32.totalorder %s29, 0
        %s325 = scalar_select %p324, %s29, 0
        %s326 = smul.addr %s323, 4
        %s327 = sadd.s32 %s325, %s326
        %s328 = smul.addr %s327, 4
        %s329 = scalar_lea.vmem %s1, %s328
        %p330 = pneg %p92
        %p331 = pneg %p89
        %p332 = pneg %p113
        %p333 = pneg %p110
        %p334 = pneg %p134
        %p335 = pneg %p131
        %p336 = pneg %p155
        %p337 = pneg %p152
        %p338 = pneg %p176
        %p339 = pneg %p173
        %p340 = pneg %p197
        %p341 = pneg %p194
        %p342 = pneg %p218
        %p343 = pneg %p215
        %p344 = pneg %p246
        %p345 = pneg %p243
        %s346 = sand.u32 %s233, 1
        %s347 = scalar_lea.sflag [#allocation7], %s346
        %s348 = sand.u32 %s233, 1
        %s349 = smul.addr %s348, 32
        %s350 = scalar_lea.vmem [#allocation6], %s349
        %p351 = scmp.lt.s32.totalorder %s27, 1
        %s352 = scalar_select %p351, %s27, 1
        %p353 = scmp.lt.s32.totalorder %s28, 0
        %s354 = scalar_select %p353, %s28, 0
        %s355 = smul.addr %s352, 4
        %s356 = sadd.s32 %s354, %s355
        %s357 = smul.addr %s356, 4
        %s358 = scalar_lea.vmem %s0, %s357
        %p359 = scmp.lt.s32.totalorder %s27, 1
        %s360 = scalar_select %p359, %s27, 1
        %p361 = scmp.lt.s32.totalorder %s29, 0
        %s362 = scalar_select %p361, %s29, 0
        %s363 = smul.addr %s360, 4
        %s364 = sadd.s32 %s362, %s363
        %s365 = smul.addr %s364, 4
        %s366 = scalar_lea.vmem %s1, %s365
        %p368 = scmp.eq.s32.totalorder %s29, 0
        // Predicated region
        $region53: #{tpu_custom_call.1} parent=51 // pred_check
          %p369 = pneg %p368
        $region54: #{tpu_custom_call.1} parent=51 // pred_check_branch
          %371 = sbr.rel (%p369) target = $region56
        $region55: #{tpu_custom_call.1} parent=51 // pred_region
          %v372 = vld [vmem:[%s358] sm:$0xf]
          %v373 = vld [vmem:[%s358 + $0x4] sm:$0xf]
          %v374 = vld [vmem:[%s358 + $0x8] sm:$0xf]
          %v375 = vld [vmem:[%s358 + $0xc] sm:$0xf]
          %v376 = vld [vmem:[%s2] sm:$0xf]
          %v377 = vld [vmem:[%s2 + $0x4] sm:$0xf]
          %v378 = vld [vmem:[%s2 + $0x8] sm:$0xf]
          %v379 = vld [vmem:[%s2 + $0xc] sm:$0xf]
          %v380 = vld [vmem:[%s3] sm:$0xff]
          %v381 = vld [vmem:[%s3 + $0x8] sm:$0xff]
          %v382 = vld [vmem:[%s3 + $0x10] sm:$0xff]
          %v383 = vld [vmem:[%s3 + $0x18] sm:$0xff]
          %385 = vset.pattern.permute.xlu0 0
          %386 = vperm.xlu0 %385, %v380
          %v387 = vpop.permute.xlu0 %386
          %390 = vset.pattern.permute.xlu0 0
          %391 = vperm.xlu0 %390, %v381
          %v392 = vpop.permute.xlu0 %391
          %395 = vset.pattern.permute.xlu0 0
          %396 = vperm.xlu0 %395, %v382
          %v397 = vpop.permute.xlu0 %396
          %400 = vset.pattern.permute.xlu0 0
          %401 = vperm.xlu0 %400, %v383
          %v402 = vpop.permute.xlu0 %401
          %v408 = vunpack.c.l.b16 %v376
          %v409 = vunpack.c.l.b16 %v377
          %v410 = vunpack.c.l.b16 %v378
          %v411 = vunpack.c.l.b16 %v379
          %v412 = vpack.c.b16 %v409, %v408
          %v413 = vpack.c.b16 %v411, %v410
          %v418 = vunpack.c.l.b16 %v372
          %v419 = vunpack.c.l.b16 %v373
          %v420 = vunpack.c.l.b16 %v374
          %v421 = vunpack.c.l.b16 %v375
          %v422 = vpack.c.b16 %v419, %v418
          %v423 = vpack.c.b16 %v421, %v420
          %vm426 = vcmask 261120
          %v428 = vsel %vm426, %v412, 0
          %v431 = vsel %vm426, %v413, 0
          %433 = vmatprep.subr.bf16.mxu0 0
          %434 = vmatpush1.bf16.msra.mxu0 0
          %435 = vmatprep.subr.bf16.mxu0 0
          %436 = vmatpush1.bf16.msra.mxu0 0
          %437 = vmatprep.subr.bf16.mxu0 0
          %438 = vmatpush1.bf16.msra.mxu0 0
          %439 = vmatprep.subr.bf16.mxu0 0
          %440 = vmatpush1.bf16.msra.mxu0 0
          %441 = vmatprep.subr.bf16.mxu0 0
          %442 = vmatpush1.bf16.msra.mxu0 0
          %443 = vmatprep.subr.bf16.mxu0 0
          %444 = vmatpush1.bf16.msra.mxu0 0
          %445 = vmatprep.subr.bf16.mxu0 0
          %446 = vmatpush1.bf16.msra.mxu0 %v423
          %447 = vmatprep.subr.bf16.mxu0 0
          %448 = vmatpush1.bf16.msra.mxu0 %v422
          %449 = vmatprep.subr.bf16.mxu0 0
          %450 = vmatpush2.bf16.msra.mxu0 0
          %451 = vmatprep.subr.bf16.mxu0 0
          %452 = vmatpush2.bf16.msra.mxu0 0
          %453 = vmatprep.subr.bf16.mxu0 0
          %454 = vmatpush2.bf16.msra.mxu0 0
          %455 = vmatprep.subr.bf16.mxu0 0
          %456 = vmatpush2.bf16.msra.mxu0 0
          %457 = vmatprep.subr.bf16.mxu0 0
          %458 = vmatpush2.bf16.msra.mxu0 0
          %459 = vmatprep.subr.bf16.mxu0 0
          %460 = vmatpush2.bf16.msra.mxu0 0
          %461 = vmatprep.subr.bf16.mxu0 0
          %462 = vmatpush2.bf16.msra.mxu0 0
          %463 = vmatprep.subr.bf16.mxu0 0
          %464 = vmatpush2.bf16.msra.mxu0 0
          %465 = vmatprep.mubr.bf16.mxu0 0
          %466 = vmatmul.mubr.bf16.gmra.mxu0 %v428
          %v467 = vpop.f32.mrf.mxu0
          %v468 = vadd.f32 %v387, %v467
          %v469 = vpop.f32.mrf.mxu0
          %v470 = vpop.f32.mrf.mxu0
          %v471 = vadd.f32 %v392, %v470
          %v472 = vpop.f32.mrf.mxu0
          %473 = vmatprep.mubr.bf16.mxu0 0
          %474 = vmatmul.mubr.bf16.gmra.mxu0 %v431
          %v475 = vpop.f32.mrf.mxu0
          %v476 = vadd.f32 %v397, %v475
          %v477 = vpop.f32.mrf.mxu0
          %v478 = vpop.f32.mrf.mxu0
          %v479 = vadd.f32 %v402, %v478
          %v480 = vpop.f32.mrf.mxu0
          %481 = vdwg.mxu0
          %vm482 = vcmask 523264
          %483 = vst.msk [vmem:[#allocation2] sm:$0xff] %vm482, %v468
          %484 = vst.msk [vmem:[#allocation2 + $0x8] sm:$0xff] %vm482, %v471
          %485 = vst.msk [vmem:[#allocation2 + $0x10] sm:$0xff] %vm482, %v476
          %486 = vst.msk [vmem:[#allocation2 + $0x18] sm:$0xff] %vm482, %v479
          %vm487 = vcmask 519168
          %488 = vst.msk [vmem:[#allocation3] sm:$0xf] %vm487, -inf
          %489 = vst.msk [vmem:[#allocation4] sm:$0xf] %vm487, 0.0
          %490 = vst.msk [vmem:[#allocation5] sm:$0xff] %vm482, 0.0
          %491 = vst.msk [vmem:[#allocation5 + $0x8] sm:$0xff] %vm482, 0.0
          %492 = vst.msk [vmem:[#allocation5 + $0x10] sm:$0xff] %vm482, 0.0
          %493 = vst.msk [vmem:[#allocation5 + $0x18] sm:$0xff] %vm482, 0.0
        $region56: #{tpu_custom_call.1} parent=51 // pred_fallthru
          _
        %v494 = vld [vmem:[%s366] sm:$0xf]
        %v495 = vld [vmem:[%s366 + $0x4] sm:$0xf]
        %v496 = vld [vmem:[%s366 + $0x8] sm:$0xf]
        %v497 = vld [vmem:[%s366 + $0xc] sm:$0xf]
        %v498 = vld [vmem:[%s4] sm:$0xf]
        %v499 = vld [vmem:[%s4 + $0x4] sm:$0xf]
        %v500 = vld [vmem:[%s4 + $0x8] sm:$0xf]
        %v501 = vld [vmem:[%s4 + $0xc] sm:$0xf]
        %v502 = vld [vmem:[%s4 + $0x10] sm:$0xf]
        %v503 = vld [vmem:[%s4 + $0x14] sm:$0xf]
        %v504 = vld [vmem:[%s4 + $0x18] sm:$0xf]
        %v505 = vld [vmem:[%s4 + $0x1c] sm:$0xf]
        %v506 = vld [vmem:[%s5] sm:$0xff]
        %v507 = vld [vmem:[%s5 + $0x8] sm:$0xff]
        %v508 = vld [vmem:[%s5 + $0x10] sm:$0xff]
        %v509 = vld [vmem:[%s5 + $0x18] sm:$0xff]
        %v510 = vld [vmem:[%s5 + $0x20] sm:$0xff]
        %v511 = vld [vmem:[%s5 + $0x28] sm:$0xff]
        %v512 = vld [vmem:[%s5 + $0x30] sm:$0xff]
        %v513 = vld [vmem:[%s5 + $0x38] sm:$0xff]
        %515 = vset.pattern.permute.xlu0 0
        %516 = vperm.xlu0 %515, %v506
        %v517 = vpop.permute.xlu0 %516
        %520 = vset.pattern.permute.xlu0 0
        %521 = vperm.xlu0 %520, %v507
        %v522 = vpop.permute.xlu0 %521
        %525 = vset.pattern.permute.xlu0 0
        %526 = vperm.xlu0 %525, %v508
        %v527 = vpop.permute.xlu0 %526
        %530 = vset.pattern.permute.xlu0 0
        %531 = vperm.xlu0 %530, %v509
        %v532 = vpop.permute.xlu0 %531
        %535 = vset.pattern.permute.xlu0 0
        %536 = vperm.xlu0 %535, %v510
        %v537 = vpop.permute.xlu0 %536
        %540 = vset.pattern.permute.xlu0 0
        %541 = vperm.xlu0 %540, %v511
        %v542 = vpop.permute.xlu0 %541
        %545 = vset.pattern.permute.xlu0 0
        %546 = vperm.xlu0 %545, %v512
        %v547 = vpop.permute.xlu0 %546
        %550 = vset.pattern.permute.xlu0 0
        %551 = vperm.xlu0 %550, %v513
        %v552 = vpop.permute.xlu0 %551
        %v562 = vunpack.c.l.b16 %v498
        %v563 = vunpack.c.l.b16 %v499
        %v564 = vunpack.c.l.b16 %v500
        %v565 = vunpack.c.l.b16 %v501
        %v566 = vunpack.c.l.b16 %v502
        %v567 = vunpack.c.l.b16 %v503
        %v568 = vunpack.c.l.b16 %v504
        %v569 = vunpack.c.l.b16 %v505
        %v570 = vpack.c.b16 %v563, %v562
        %v571 = vpack.c.b16 %v565, %v564
        %v572 = vpack.c.b16 %v567, %v566
        %v573 = vpack.c.b16 %v569, %v568
        %v578 = vunpack.c.l.b16 %v494
        %v579 = vunpack.c.l.b16 %v495
        %v580 = vunpack.c.l.b16 %v496
        %v581 = vunpack.c.l.b16 %v497
        %v582 = vpack.c.b16 %v579, %v578
        %v583 = vpack.c.b16 %v581, %v580
        %vm586 = vcmask 261120
        %v588 = vsel %vm586, %v570, 0
        %v591 = vsel %vm586, %v571, 0
        %v594 = vsel %vm586, %v572, 0
        %v597 = vsel %vm586, %v573, 0
        %599 = vmatprep.subr.bf16.mxu0 0
        %600 = vmatpush1.bf16.msra.mxu0 0
        %601 = vmatprep.subr.bf16.mxu0 0
        %602 = vmatpush1.bf16.msra.mxu0 0
        %603 = vmatprep.subr.bf16.mxu0 0
        %604 = vmatpush1.bf16.msra.mxu0 0
        %605 = vmatprep.subr.bf16.mxu0 0
        %606 = vmatpush1.bf16.msra.mxu0 0
        %607 = vmatprep.subr.bf16.mxu0 0
        %608 = vmatpush1.bf16.msra.mxu0 0
        %609 = vmatprep.subr.bf16.mxu0 0
        %610 = vmatpush1.bf16.msra.mxu0 0
        %611 = vmatprep.subr.bf16.mxu0 0
        %612 = vmatpush1.bf16.msra.mxu0 %v583
        %613 = vmatprep.subr.bf16.mxu0 0
        %614 = vmatpush1.bf16.msra.mxu0 %v582
        %615 = vmatprep.subr.bf16.mxu0 0
        %616 = vmatpush2.bf16.msra.mxu0 0
        %617 = vmatprep.subr.bf16.mxu0 0
        %618 = vmatpush2.bf16.msra.mxu0 0
        %619 = vmatprep.subr.bf16.mxu0 0
        %620 = vmatpush2.bf16.msra.mxu0 0
        %621 = vmatprep.subr.bf16.mxu0 0
        %622 = vmatpush2.bf16.msra.mxu0 0
        %623 = vmatprep.subr.bf16.mxu0 0
        %624 = vmatpush2.bf16.msra.mxu0 0
        %625 = vmatprep.subr.bf16.mxu0 0
        %626 = vmatpush2.bf16.msra.mxu0 0
        %627 = vmatprep.subr.bf16.mxu0 0
        %628 = vmatpush2.bf16.msra.mxu0 0
        %629 = vmatprep.subr.bf16.mxu0 0
        %630 = vmatpush2.bf16.msra.mxu0 0
        %631 = vmatprep.mubr.bf16.mxu0 0
        %632 = vmatmul.mubr.bf16.gmra.mxu0 %v588
        %v633 = vpop.f32.mrf.mxu0
        %v634 = vadd.f32 %v517, %v633
        %v635 = vpop.f32.mrf.mxu0
        %v636 = vpop.f32.mrf.mxu0
        %v637 = vadd.f32 %v522, %v636
        %v638 = vpop.f32.mrf.mxu0
        %639 = vmatprep.mubr.bf16.mxu0 0
        %640 = vmatmul.mubr.bf16.gmra.mxu0 %v591
        %v641 = vpop.f32.mrf.mxu0
        %v642 = vadd.f32 %v527, %v641
        %v643 = vpop.f32.mrf.mxu0
        %v644 = vpop.f32.mrf.mxu0
        %v645 = vadd.f32 %v532, %v644
        %v646 = vpop.f32.mrf.mxu0
        %647 = vmatprep.mubr.bf16.mxu0 0
        %648 = vmatmul.mubr.bf16.gmra.mxu0 %v594
        %v649 = vpop.f32.mrf.mxu0
        %v650 = vadd.f32 %v537, %v649
        %v651 = vpop.f32.mrf.mxu0
        %v652 = vpop.f32.mrf.mxu0
        %v653 = vadd.f32 %v542, %v652
        %v654 = vpop.f32.mrf.mxu0
        %655 = vmatprep.mubr.bf16.mxu0 0
        %656 = vmatmul.mubr.bf16.gmra.mxu0 %v597
        %v657 = vpop.f32.mrf.mxu0
        %v658 = vadd.f32 %v547, %v657
        %v659 = vpop.f32.mrf.mxu0
        %v660 = vpop.f32.mrf.mxu0
        %v661 = vadd.f32 %v552, %v660
        %v662 = vpop.f32.mrf.mxu0
        %663 = vdwg.mxu0
        %v664 = vld [vmem:[#allocation2] sm:$0xff]
        %v665 = vpack.c.bf16 %v664, %v664
        %v666 = vpack.c.bf16 %v634, %v634
        %v667 = vpack.c.bf16 %v650, %v650
        %668 = vxpose.xlu0.c.b16.start [1/8] %v666, 128
        %669 = vxpose.xlu0.c.b16.cont [2/8] 0, 128
        %670 = vxpose.xlu0.c.b16.cont [3/8] 0, 128
        %671 = vxpose.xlu0.c.b16.cont [4/8] 0, 128
        %672 = vxpose.xlu0.c.b16.cont [5/8] 0, 128
        %673 = vxpose.xlu0.c.b16.cont [6/8] 0, 128
        %674 = vxpose.xlu0.c.b16.cont [7/8] 0, 128
        %675 = vxpose.xlu0.c.b16.end [8/8] 0, 128
        %v676 = vpop.trf.xlu0
        %v677 = vpop.trf.xlu0
        %v678 = vpop.trf.xlu0
        %v679 = vpop.trf.xlu0
        %v680 = vpop.trf.xlu0
        %v681 = vpop.trf.xlu0
        %v682 = vpop.trf.xlu0
        %v683 = vpop.trf.xlu0
        %vm684 = vcmask 64512
        %v686 = vsel %vm684, %v676, 0
        %v689 = vsel %vm684, %v677, 0
        %v692 = vsel %vm684, %v678, 0
        %v695 = vsel %vm684, %v679, 0
        %vm697 = vcmask 1043456
        %v699 = vsel %vm697, %v665, 0
        %701 = vmatprep.subr.bf16.mxu0 0
        %702 = vmatpush1.bf16.msra.mxu0 0
        %703 = vmatprep.subr.bf16.mxu0 0
        %704 = vmatpush1.bf16.msra.mxu0 0
        %705 = vmatprep.subr.bf16.mxu0 0
        %706 = vmatpush1.bf16.msra.mxu0 0
        %707 = vmatprep.subr.bf16.mxu0 0
        %708 = vmatpush1.bf16.msra.mxu0 0
        %709 = vmatprep.subr.bf16.mxu0 0
        %710 = vmatpush1.bf16.msra.mxu0 0
        %711 = vmatprep.subr.bf16.mxu0 0
        %712 = vmatpush1.bf16.msra.mxu0 0
        %713 = vmatprep.subr.bf16.mxu0 0
        %714 = vmatpush1.bf16.msra.mxu0 0
        %715 = vmatprep.subr.bf16.mxu0 0
        %716 = vmatpush1.bf16.msra.mxu0 %v699
        %717 = vmatprep.subr.bf16.mxu0 0
        %718 = vmatpush2.bf16.msra.mxu0 0
        %719 = vmatprep.subr.bf16.mxu0 0
        %720 = vmatpush2.bf16.msra.mxu0 0
        %721 = vmatprep.subr.bf16.mxu0 0
        %722 = vmatpush2.bf16.msra.mxu0 0
        %723 = vmatprep.subr.bf16.mxu0 0
        %724 = vmatpush2.bf16.msra.mxu0 0
        %725 = vmatprep.subr.bf16.mxu0 0
        %726 = vmatpush2.bf16.msra.mxu0 0
        %727 = vmatprep.subr.bf16.mxu0 0
        %728 = vmatpush2.bf16.msra.mxu0 0
        %729 = vmatprep.subr.bf16.mxu0 0
        %730 = vmatpush2.bf16.msra.mxu0 0
        %731 = vmatprep.subr.bf16.mxu0 0
        %732 = vmatpush2.bf16.msra.mxu0 0
        %733 = vmatprep.mubr.bf16.mxu0 0
        %734 = vmatmul.mubr.bf16.gmra.mxu0 %v686
        %v735 = vpop.f32.mrf.mxu0
        %v736 = vadd.f32 0.0, %v735
        %v737 = vpop.f32.mrf.mxu0
        %v738 = vpop.f32.mrf.mxu0
        %v739 = vadd.f32 0.0, %v738
        %v740 = vpop.f32.mrf.mxu0
        %741 = vmatprep.mubr.bf16.mxu0 0
        %742 = vmatmul.mubr.bf16.gmra.mxu0 %v689
        %v743 = vpop.f32.mrf.mxu0
        %v744 = vadd.f32 0.0, %v743
        %v745 = vpop.f32.mrf.mxu0
        %v746 = vpop.f32.mrf.mxu0
        %v747 = vadd.f32 0.0, %v746
        %v748 = vpop.f32.mrf.mxu0
        %749 = vmatprep.mubr.bf16.mxu0 0
        %750 = vmatmul.mubr.bf16.gmra.mxu0 %v692
        %v751 = vpop.f32.mrf.mxu0
        %v752 = vadd.f32 0.0, %v751
        %v753 = vpop.f32.mrf.mxu0
        %v754 = vpop.f32.mrf.mxu0
        %v755 = vadd.f32 0.0, %v754
        %v756 = vpop.f32.mrf.mxu0
        %757 = vmatprep.mubr.bf16.mxu0 0
        %758 = vmatmul.mubr.bf16.gmra.mxu0 %v695
        %v759 = vpop.f32.mrf.mxu0
        %v760 = vadd.f32 0.0, %v759
        %v761 = vpop.f32.mrf.mxu0
        %v762 = vpop.f32.mrf.mxu0
        %v763 = vadd.f32 0.0, %v762
        %v764 = vpop.f32.mrf.mxu0
        %765 = vdwg.mxu0
        %v766 = vld [vmem:[#allocation3] sm:$0x1]
        %vm767 = vcmask 523264
        %v768 = vsel %vm767, %v736, -inf
        %v769 = vsel %vm767, %v739, -inf
        %v770 = vsel %vm767, %v744, -inf
        %v771 = vsel %vm767, %v747, -inf
        %v772 = vsel %vm767, %v752, -inf
        %v773 = vmax.f32 %v768, %v772
        %v774 = vsel %vm767, %v755, -inf
        %v775 = vmax.f32 %v769, %v774
        %v776 = vsel %vm767, %v760, -inf
        %v777 = vmax.f32 %v770, %v776
        %v778 = vsel %vm767, %v763, -inf
        %v779 = vmax.f32 %v771, %v778
        %v780 = vmax.f32 %v773, %v775
        %v781 = vmax.f32 %v777, %v779
        %v782 = vmax.f32 %v780, %v781
        %v783 = vrot.slane %v782, 4
        %v784 = vmax.f32 %v782, %v783
        %v785 = vrot.slane %v784, 2
        %v786 = vmax.f32 %v784, %v785
        %v787 = vrot.slane %v786, 1
        %v788 = vmax.f32 %v786, %v787
        %v789 = vmax.f32 %v766, %v788
        %v790 = vsub.f32 %v766, %v789
        %v791 = vmul.f32 %v790, 1.442695
        %v792 = vpow.pop %v791
        %v793 = vlaneseq
        %v794 = vshrl.u32 %v793, 7
        %v795 = vsub.s32 0, %v794
        %v796 = vrot.slane %v789, %v795
        %v797 = vsub.f32 %v736, %v796
        %v798 = vsub.f32 %v739, %v796
        %v799 = vsub.f32 %v744, %v796
        %v800 = vsub.f32 %v747, %v796
        %v801 = vsub.f32 %v752, %v796
        %v802 = vsub.f32 %v755, %v796
        %v803 = vsub.f32 %v760, %v796
        %v804 = vsub.f32 %v763, %v796
        %v805 = vmul.f32 %v797, 1.442695
        %v806 = vpow.pop %v805
        %v807 = vmul.f32 %v798, 1.442695
        %v808 = vpow.pop %v807
        %v809 = vmul.f32 %v799, 1.442695
        %v810 = vpow.pop %v809
        %v811 = vmul.f32 %v800, 1.442695
        %v812 = vpow.pop %v811
        %v813 = vmul.f32 %v801, 1.442695
        %v814 = vpow.pop %v813
        %v815 = vmul.f32 %v802, 1.442695
        %v816 = vpow.pop %v815
        %v817 = vmul.f32 %v803, 1.442695
        %v818 = vpow.pop %v817
        %v819 = vmul.f32 %v804, 1.442695
        %v820 = vpow.pop %v819
        %v821 = vld [vmem:[#allocation4] sm:$0x1]
        %v822 = vmul.f32 %v792, %v821
        %v823 = vsel %vm767, %v806, 0.0
        %v824 = vsel %vm767, %v808, 0.0
        %v825 = vadd.f32 %v823, %v824
        %v826 = vsel %vm767, %v810, 0.0
        %v827 = vadd.f32 %v825, %v826
        %v828 = vsel %vm767, %v812, 0.0
        %v829 = vadd.f32 %v827, %v828
        %v830 = vsel %vm767, %v814, 0.0
        %v831 = vadd.f32 %v829, %v830
        %v832 = vsel %vm767, %v816, 0.0
        %v833 = vadd.f32 %v831, %v832
        %v834 = vsel %vm767, %v818, 0.0
        %v835 = vadd.f32 %v833, %v834
        %v836 = vsel %vm767, %v820, 0.0
        %v837 = vadd.f32 %v835, %v836
        %v838 = vrot.slane %v837, 4
        %v839 = vadd.f32 %v837, %v838
        %v840 = vrot.slane %v839, 2
        %v841 = vadd.f32 %v839, %v840
        %v842 = vrot.slane %v841, 1
        %v843 = vadd.f32 %v841, %v842
        %v844 = vadd.f32 %v822, %v843
        %vm845 = vcmask 516096
        %846 = vst.msk [vmem:[#allocation4] sm:$0x1] %vm845, %v844
        %v847 = vpack.c.bf16 %v808, %v806
        %v848 = vpack.c.bf16 %v812, %v810
        %v849 = vpack.c.bf16 %v816, %v814
        %v850 = vpack.c.bf16 %v820, %v818
        %v852 = vsel %vm767, %v667, 0
        %854 = vmatprep.subr.bf16.mxu0 0
        %855 = vmatpush1.bf16.msra.mxu0 0
        %856 = vmatprep.subr.bf16.mxu0 0
        %857 = vmatpush1.bf16.msra.mxu0 0
        %858 = vmatprep.subr.bf16.mxu0 0
        %859 = vmatpush1.bf16.msra.mxu0 0
        %860 = vmatprep.subr.bf16.mxu0 0
        %861 = vmatpush1.bf16.msra.mxu0 0
        %862 = vmatprep.subr.bf16.mxu0 0
        %863 = vmatpush1.bf16.msra.mxu0 %v850
        %864 = vmatprep.subr.bf16.mxu0 0
        %865 = vmatpush1.bf16.msra.mxu0 %v849
        %866 = vmatprep.subr.bf16.mxu0 0
        %867 = vmatpush1.bf16.msra.mxu0 %v848
        %868 = vmatprep.subr.bf16.mxu0 0
        %869 = vmatpush1.bf16.msra.mxu0 %v847
        %870 = vmatprep.subr.bf16.mxu0 0
        %871 = vmatpush2.bf16.msra.mxu0 0
        %872 = vmatprep.subr.bf16.mxu0 0
        %873 = vmatpush2.bf16.msra.mxu0 0
        %874 = vmatprep.subr.bf16.mxu0 0
        %875 = vmatpush2.bf16.msra.mxu0 0
        %876 = vmatprep.subr.bf16.mxu0 0
        %877 = vmatpush2.bf16.msra.mxu0 0
        %878 = vmatprep.subr.bf16.mxu0 0
        %879 = vmatpush2.bf16.msra.mxu0 0
        %880 = vmatprep.subr.bf16.mxu0 0
        %881 = vmatpush2.bf16.msra.mxu0 0
        %882 = vmatprep.subr.bf16.mxu0 0
        %883 = vmatpush2.bf16.msra.mxu0 0
        %884 = vmatprep.subr.bf16.mxu0 0
        %885 = vmatpush2.bf16.msra.mxu0 0
        %886 = vmatprep.mubr.bf16.mxu0 0
        %887 = vmatmul.mubr.bf16.gmra.mxu0 %v852
        %v888 = vpop.f32.mrf.mxu0
        %v889 = vadd.f32 0.0, %v888
        %v890 = vpop.f32.mrf.mxu0
        %v891 = vpop.f32.mrf.mxu0
        %v892 = vpop.f32.mrf.mxu0
        %893 = vdwg.mxu0
        %v894 = vld [vmem:[#allocation5] sm:$0xff]
        %v895 = vlaneseq
        %v896 = vshrl.u32 %v895, 7
        %v897 = vsub.s32 0, %v896
        %v898 = vrot.slane %v792, %v897
        %v899 = vmul.f32 %v898, %v894
        %v900 = vadd.f32 %v899, %v889
        %901 = vst.msk [vmem:[#allocation5] sm:$0xff] %vm767, %v900
        %902 = vst.msk [vmem:[#allocation3] sm:$0x1] %vm845, %v789
        %v903 = vld [vmem:[#allocation2 + $0x8] sm:$0xff]
        %v904 = vpack.c.bf16 %v903, %v903
        %v905 = vpack.c.bf16 %v637, %v637
        %v906 = vpack.c.bf16 %v653, %v653
        %907 = vxpose.xlu0.c.b16.start [1/8] %v905, 128
        %908 = vxpose.xlu0.c.b16.cont [2/8] 0, 128
        %909 = vxpose.xlu0.c.b16.cont [3/8] 0, 128
        %910 = vxpose.xlu0.c.b16.cont [4/8] 0, 128
        %911 = vxpose.xlu0.c.b16.cont [5/8] 0, 128
        %912 = vxpose.xlu0.c.b16.cont [6/8] 0, 128
        %913 = vxpose.xlu0.c.b16.cont [7/8] 0, 128
        %914 = vxpose.xlu0.c.b16.end [8/8] 0, 128
        %v915 = vpop.trf.xlu0
        %v916 = vpop.trf.xlu0
        %v917 = vpop.trf.xlu0
        %v918 = vpop.trf.xlu0
        %v919 = vpop.trf.xlu0
        %v920 = vpop.trf.xlu0
        %v921 = vpop.trf.xlu0
        %v922 = vpop.trf.xlu0
        %v924 = vsel %vm684, %v915, 0
        %v927 = vsel %vm684, %v916, 0
        %v930 = vsel %vm684, %v917, 0
        %v933 = vsel %vm684, %v918, 0
        %v936 = vsel %vm697, %v904, 0
        %938 = vmatprep.subr.bf16.mxu0 0
        %939 = vmatpush1.bf16.msra.mxu0 0
        %940 = vmatprep.subr.bf16.mxu0 0
        %941 = vmatpush1.bf16.msra.mxu0 0
        %942 = vmatprep.subr.bf16.mxu0 0
        %943 = vmatpush1.bf16.msra.mxu0 0
        %944 = vmatprep.subr.bf16.mxu0 0
        %945 = vmatpush1.bf16.msra.mxu0 0
        %946 = vmatprep.subr.bf16.mxu0 0
        %947 = vmatpush1.bf16.msra.mxu0 0
        %948 = vmatprep.subr.bf16.mxu0 0
        %949 = vmatpush1.bf16.msra.mxu0 0
        %950 = vmatprep.subr.bf16.mxu0 0
        %951 = vmatpush1.bf16.msra.mxu0 0
        %952 = vmatprep.subr.bf16.mxu0 0
        %953 = vmatpush1.bf16.msra.mxu0 %v936
        %954 = vmatprep.subr.bf16.mxu0 0
        %955 = vmatpush2.bf16.msra.mxu0 0
        %956 = vmatprep.subr.bf16.mxu0 0
        %957 = vmatpush2.bf16.msra.mxu0 0
        %958 = vmatprep.subr.bf16.mxu0 0
        %959 = vmatpush2.bf16.msra.mxu0 0
        %960 = vmatprep.subr.bf16.mxu0 0
        %961 = vmatpush2.bf16.msra.mxu0 0
        %962 = vmatprep.subr.bf16.mxu0 0
        %963 = vmatpush2.bf16.msra.mxu0 0
        %964 = vmatprep.subr.bf16.mxu0 0
        %965 = vmatpush2.bf16.msra.mxu0 0
        %966 = vmatprep.subr.bf16.mxu0 0
        %967 = vmatpush2.bf16.msra.mxu0 0
        %968 = vmatprep.subr.bf16.mxu0 0
        %969 = vmatpush2.bf16.msra.mxu0 0
        %970 = vmatprep.mubr.bf16.mxu0 0
        %971 = vmatmul.mubr.bf16.gmra.mxu0 %v924
        %v972 = vpop.f32.mrf.mxu0
        %v973 = vadd.f32 0.0, %v972
        %v974 = vpop.f32.mrf.mxu0
        %v975 = vpop.f32.mrf.mxu0
        %v976 = vadd.f32 0.0, %v975
        %v977 = vpop.f32.mrf.mxu0
        %978 = vmatprep.mubr.bf16.mxu0 0
        %979 = vmatmul.mubr.bf16.gmra.mxu0 %v927
        %v980 = vpop.f32.mrf.mxu0
        %v981 = vadd.f32 0.0, %v980
        %v982 = vpop.f32.mrf.mxu0
        %v983 = vpop.f32.mrf.mxu0
        %v984 = vadd.f32 0.0, %v983
        %v985 = vpop.f32.mrf.mxu0
        %986 = vmatprep.mubr.bf16.mxu0 0
        %987 = vmatmul.mubr.bf16.gmra.mxu0 %v930
        %v988 = vpop.f32.mrf.mxu0
        %v989 = vadd.f32 0.0, %v988
        %v990 = vpop.f32.mrf.mxu0
        %v991 = vpop.f32.mrf.mxu0
        %v992 = vadd.f32 0.0, %v991
        %v993 = vpop.f32.mrf.mxu0
        %994 = vmatprep.mubr.bf16.mxu0 0
        %995 = vmatmul.mubr.bf16.gmra.mxu0 %v933
        %v996 = vpop.f32.mrf.mxu0
        %v997 = vadd.f32 0.0, %v996
        %v998 = vpop.f32.mrf.mxu0
        %v999 = vpop.f32.mrf.mxu0
        %v1000 = vadd.f32 0.0, %v999
        %v1001 = vpop.f32.mrf.mxu0
        %1002 = vdwg.mxu0
        %v1003 = vld [vmem:[#allocation3 + $0x1] sm:$0x1]
        %v1004 = vsel %vm767, %v973, -inf
        %v1005 = vsel %vm767, %v976, -inf
        %v1006 = vsel %vm767, %v981, -inf
        %v1007 = vsel %vm767, %v984, -inf
        %v1008 = vsel %vm767, %v989, -inf
        %v1009 = vmax.f32 %v1004, %v1008
        %v1010 = vsel %vm767, %v992, -inf
        %v1011 = vmax.f32 %v1005, %v1010
        %v1012 = vsel %vm767, %v997, -inf
        %v1013 = vmax.f32 %v1006, %v1012
        %v1014 = vsel %vm767, %v1000, -inf
        %v1015 = vmax.f32 %v1007, %v1014
        %v1016 = vmax.f32 %v1009, %v1011
        %v1017 = vmax.f32 %v1013, %v1015
        %v1018 = vmax.f32 %v1016, %v1017
        %v1019 = vrot.slane %v1018, 4
        %v1020 = vmax.f32 %v1018, %v1019
        %v1021 = vrot.slane %v1020, 2
        %v1022 = vmax.f32 %v1020, %v1021
        %v1023 = vrot.slane %v1022, 1
        %v1024 = vmax.f32 %v1022, %v1023
        %v1025 = vmax.f32 %v1003, %v1024
        %v1026 = vsub.f32 %v1003, %v1025
        %v1027 = vmul.f32 %v1026, 1.442695
        %v1028 = vpow.pop %v1027
        %v1029 = vlaneseq
        %v1030 = vshrl.u32 %v1029, 7
        %v1031 = vsub.s32 0, %v1030
        %v1032 = vrot.slane %v1025, %v1031
        %v1033 = vsub.f32 %v973, %v1032
        %v1034 = vsub.f32 %v976, %v1032
        %v1035 = vsub.f32 %v981, %v1032
        %v1036 = vsub.f32 %v984, %v1032
        %v1037 = vsub.f32 %v989, %v1032
        %v1038 = vsub.f32 %v992, %v1032
        %v1039 = vsub.f32 %v997, %v1032
        %v1040 = vsub.f32 %v1000, %v1032
        %v1041 = vmul.f32 %v1033, 1.442695
        %v1042 = vpow.pop %v1041
        %v1043 = vmul.f32 %v1034, 1.442695
        %v1044 = vpow.pop %v1043
        %v1045 = vmul.f32 %v1035, 1.442695
        %v1046 = vpow.pop %v1045
        %v1047 = vmul.f32 %v1036, 1.442695
        %v1048 = vpow.pop %v1047
        %v1049 = vmul.f32 %v1037, 1.442695
        %v1050 = vpow.pop %v1049
        %v1051 = vmul.f32 %v1038, 1.442695
        %v1052 = vpow.pop %v1051
        %v1053 = vmul.f32 %v1039, 1.442695
        %v1054 = vpow.pop %v1053
        %v1055 = vmul.f32 %v1040, 1.442695
        %v1056 = vpow.pop %v1055
        %v1057 = vld [vmem:[#allocation4 + $0x1] sm:$0x1]
        %v1058 = vmul.f32 %v1028, %v1057
        %v1059 = vsel %vm767, %v1042, 0.0
        %v1060 = vsel %vm767, %v1044, 0.0
        %v1061 = vadd.f32 %v1059, %v1060
        %v1062 = vsel %vm767, %v1046, 0.0
        %v1063 = vadd.f32 %v1061, %v1062
        %v1064 = vsel %vm767, %v1048, 0.0
        %v1065 = vadd.f32 %v1063, %v1064
        %v1066 = vsel %vm767, %v1050, 0.0
        %v1067 = vadd.f32 %v1065, %v1066
        %v1068 = vsel %vm767, %v1052, 0.0
        %v1069 = vadd.f32 %v1067, %v1068
        %v1070 = vsel %vm767, %v1054, 0.0
        %v1071 = vadd.f32 %v1069, %v1070
        %v1072 = vsel %vm767, %v1056, 0.0
        %v1073 = vadd.f32 %v1071, %v1072
        %v1074 = vrot.slane %v1073, 4
        %v1075 = vadd.f32 %v1073, %v1074
        %v1076 = vrot.slane %v1075, 2
        %v1077 = vadd.f32 %v1075, %v1076
        %v1078 = vrot.slane %v1077, 1
        %v1079 = vadd.f32 %v1077, %v1078
        %v1080 = vadd.f32 %v1058, %v1079
        %1081 = vst.msk [vmem:[#allocation4 + $0x1] sm:$0x1] %vm845, %v1080
        %v1082 = vpack.c.bf16 %v1044, %v1042
        %v1083 = vpack.c.bf16 %v1048, %v1046
        %v1084 = vpack.c.bf16 %v1052, %v1050
        %v1085 = vpack.c.bf16 %v1056, %v1054
        %v1087 = vsel %vm767, %v906, 0
        %1089 = vmatprep.subr.bf16.mxu0 0
        %1090 = vmatpush1.bf16.msra.mxu0 0
        %1091 = vmatprep.subr.bf16.mxu0 0
        %1092 = vmatpush1.bf16.msra.mxu0 0
        %1093 = vmatprep.subr.bf16.mxu0 0
        %1094 = vmatpush1.bf16.msra.mxu0 0
        %1095 = vmatprep.subr.bf16.mxu0 0
        %1096 = vmatpush1.bf16.msra.mxu0 0
        %1097 = vmatprep.subr.bf16.mxu0 0
        %1098 = vmatpush1.bf16.msra.mxu0 %v1085
        %1099 = vmatprep.subr.bf16.mxu0 0
        %1100 = vmatpush1.bf16.msra.mxu0 %v1084
        %1101 = vmatprep.subr.bf16.mxu0 0
        %1102 = vmatpush1.bf16.msra.mxu0 %v1083
        %1103 = vmatprep.subr.bf16.mxu0 0
        %1104 = vmatpush1.bf16.msra.mxu0 %v1082
        %1105 = vmatprep.subr.bf16.mxu0 0
        %1106 = vmatpush2.bf16.msra.mxu0 0
        %1107 = vmatprep.subr.bf16.mxu0 0
        %1108 = vmatpush2.bf16.msra.mxu0 0
        %1109 = vmatprep.subr.bf16.mxu0 0
        %1110 = vmatpush2.bf16.msra.mxu0 0
        %1111 = vmatprep.subr.bf16.mxu0 0
        %1112 = vmatpush2.bf16.msra.mxu0 0
        %1113 = vmatprep.subr.bf16.mxu0 0
        %1114 = vmatpush2.bf16.msra.mxu0 0
        %1115 = vmatprep.subr.bf16.mxu0 0
        %1116 = vmatpush2.bf16.msra.mxu0 0
        %1117 = vmatprep.subr.bf16.mxu0 0
        %1118 = vmatpush2.bf16.msra.mxu0 0
        %1119 = vmatprep.subr.bf16.mxu0 0
        %1120 = vmatpush2.bf16.msra.mxu0 0
        %1121 = vmatprep.mubr.bf16.mxu0 0
        %1122 = vmatmul.mubr.bf16.gmra.mxu0 %v1087
        %v1123 = vpop.f32.mrf.mxu0
        %v1124 = vadd.f32 0.0, %v1123
        %v1125 = vpop.f32.mrf.mxu0
        %v1126 = vpop.f32.mrf.mxu0
        %v1127 = vpop.f32.mrf.mxu0
        %1128 = vdwg.mxu0
        %v1129 = vld [vmem:[#allocation5 + $0x8] sm:$0xff]
        %v1130 = vlaneseq
        %v1131 = vshrl.u32 %v1130, 7
        %v1132 = vsub.s32 0, %v1131
        %v1133 = vrot.slane %v1028, %v1132
        %v1134 = vmul.f32 %v1133, %v1129
        %v1135 = vadd.f32 %v1134, %v1124
        %1136 = vst.msk [vmem:[#allocation5 + $0x8] sm:$0xff] %vm767, %v1135
        %1137 = vst.msk [vmem:[#allocation3 + $0x1] sm:$0x1] %vm845, %v1025
        %v1138 = vld [vmem:[#allocation2 + $0x10] sm:$0xff]
        %v1139 = vpack.c.bf16 %v1138, %v1138
        %v1140 = vpack.c.bf16 %v642, %v642
        %v1141 = vpack.c.bf16 %v658, %v658
        %1142 = vxpose.xlu0.c.b16.start [1/8] %v1140, 128
        %1143 = vxpose.xlu0.c.b16.cont [2/8] 0, 128
        %1144 = vxpose.xlu0.c.b16.cont [3/8] 0, 128
        %1145 = vxpose.xlu0.c.b16.cont [4/8] 0, 128
        %1146 = vxpose.xlu0.c.b16.cont [5/8] 0, 128
        %1147 = vxpose.xlu0.c.b16.cont [6/8] 0, 128
        %1148 = vxpose.xlu0.c.b16.cont [7/8] 0, 128
        %1149 = vxpose.xlu0.c.b16.end [8/8] 0, 128
        %v1150 = vpop.trf.xlu0
        %v1151 = vpop.trf.xlu0
        %v1152 = vpop.trf.xlu0
        %v1153 = vpop.trf.xlu0
        %v1154 = vpop.trf.xlu0
        %v1155 = vpop.trf.xlu0
        %v1156 = vpop.trf.xlu0
        %v1157 = vpop.trf.xlu0
        %v1159 = vsel %vm684, %v1150, 0
        %v1162 = vsel %vm684, %v1151, 0
        %v1165 = vsel %vm684, %v1152, 0
        %v1168 = vsel %vm684, %v1153, 0
        %v1171 = vsel %vm697, %v1139, 0
        %1173 = vmatprep.subr.bf16.mxu0 0
        %1174 = vmatpush1.bf16.msra.mxu0 0
        %1175 = vmatprep.subr.bf16.mxu0 0
        %1176 = vmatpush1.bf16.msra.mxu0 0
        %1177 = vmatprep.subr.bf16.mxu0 0
        %1178 = vmatpush1.bf16.msra.mxu0 0
        %1179 = vmatprep.subr.bf16.mxu0 0
        %1180 = vmatpush1.bf16.msra.mxu0 0
        %1181 = vmatprep.subr.bf16.mxu0 0
        %1182 = vmatpush1.bf16.msra.mxu0 0
        %1183 = vmatprep.subr.bf16.mxu0 0
        %1184 = vmatpush1.bf16.msra.mxu0 0
        %1185 = vmatprep.subr.bf16.mxu0 0
        %1186 = vmatpush1.bf16.msra.mxu0 0
        %1187 = vmatprep.subr.bf16.mxu0 0
        %1188 = vmatpush1.bf16.msra.mxu0 %v1171
        %1189 = vmatprep.subr.bf16.mxu0 0
        %1190 = vmatpush2.bf16.msra.mxu0 0
        %1191 = vmatprep.subr.bf16.mxu0 0
        %1192 = vmatpush2.bf16.msra.mxu0 0
        %1193 = vmatprep.subr.bf16.mxu0 0
        %1194 = vmatpush2.bf16.msra.mxu0 0
        %1195 = vmatprep.subr.bf16.mxu0 0
        %1196 = vmatpush2.bf16.msra.mxu0 0
        %1197 = vmatprep.subr.bf16.mxu0 0
        %1198 = vmatpush2.bf16.msra.mxu0 0
        %1199 = vmatprep.subr.bf16.mxu0 0
        %1200 = vmatpush2.bf16.msra.mxu0 0
        %1201 = vmatprep.subr.bf16.mxu0 0
        %1202 = vmatpush2.bf16.msra.mxu0 0
        %1203 = vmatprep.subr.bf16.mxu0 0
        %1204 = vmatpush2.bf16.msra.mxu0 0
        %1205 = vmatprep.mubr.bf16.mxu0 0
        %1206 = vmatmul.mubr.bf16.gmra.mxu0 %v1159
        %v1207 = vpop.f32.mrf.mxu0
        %v1208 = vadd.f32 0.0, %v1207
        %v1209 = vpop.f32.mrf.mxu0
        %v1210 = vpop.f32.mrf.mxu0
        %v1211 = vadd.f32 0.0, %v1210
        %v1212 = vpop.f32.mrf.mxu0
        %1213 = vmatprep.mubr.bf16.mxu0 0
        %1214 = vmatmul.mubr.bf16.gmra.mxu0 %v1162
        %v1215 = vpop.f32.mrf.mxu0
        %v1216 = vadd.f32 0.0, %v1215
        %v1217 = vpop.f32.mrf.mxu0
        %v1218 = vpop.f32.mrf.mxu0
        %v1219 = vadd.f32 0.0, %v1218
        %v1220 = vpop.f32.mrf.mxu0
        %1221 = vmatprep.mubr.bf16.mxu0 0
        %1222 = vmatmul.mubr.bf16.gmra.mxu0 %v1165
        %v1223 = vpop.f32.mrf.mxu0
        %v1224 = vadd.f32 0.0, %v1223
        %v1225 = vpop.f32.mrf.mxu0
        %v1226 = vpop.f32.mrf.mxu0
        %v1227 = vadd.f32 0.0, %v1226
        %v1228 = vpop.f32.mrf.mxu0
        %1229 = vmatprep.mubr.bf16.mxu0 0
        %1230 = vmatmul.mubr.bf16.gmra.mxu0 %v1168
        %v1231 = vpop.f32.mrf.mxu0
        %v1232 = vadd.f32 0.0, %v1231
        %v1233 = vpop.f32.mrf.mxu0
        %v1234 = vpop.f32.mrf.mxu0
        %v1235 = vadd.f32 0.0, %v1234
        %v1236 = vpop.f32.mrf.mxu0
        %1237 = vdwg.mxu0
        %v1238 = vld [vmem:[#allocation3 + $0x2] sm:$0x1]
        %v1239 = vsel %vm767, %v1208, -inf
        %v1240 = vsel %vm767, %v1211, -inf
        %v1241 = vsel %vm767, %v1216, -inf
        %v1242 = vsel %vm767, %v1219, -inf
        %v1243 = vsel %vm767, %v1224, -inf
        %v1244 = vmax.f32 %v1239, %v1243
        %v1245 = vsel %vm767, %v1227, -inf
        %v1246 = vmax.f32 %v1240, %v1245
        %v1247 = vsel %vm767, %v1232, -inf
        %v1248 = vmax.f32 %v1241, %v1247
        %v1249 = vsel %vm767, %v1235, -inf
        %v1250 = vmax.f32 %v1242, %v1249
        %v1251 = vmax.f32 %v1244, %v1246
        %v1252 = vmax.f32 %v1248, %v1250
        %v1253 = vmax.f32 %v1251, %v1252
        %v1254 = vrot.slane %v1253, 4
        %v1255 = vmax.f32 %v1253, %v1254
        %v1256 = vrot.slane %v1255, 2
        %v1257 = vmax.f32 %v1255, %v1256
        %v1258 = vrot.slane %v1257, 1
        %v1259 = vmax.f32 %v1257, %v1258
        %v1260 = vmax.f32 %v1238, %v1259
        %v1261 = vsub.f32 %v1238, %v1260
        %v1262 = vmul.f32 %v1261, 1.442695
        %v1263 = vpow.pop %v1262
        %v1264 = vlaneseq
        %v1265 = vshrl.u32 %v1264, 7
        %v1266 = vsub.s32 0, %v1265
        %v1267 = vrot.slane %v1260, %v1266
        %v1268 = vsub.f32 %v1208, %v1267
        %v1269 = vsub.f32 %v1211, %v1267
        %v1270 = vsub.f32 %v1216, %v1267
        %v1271 = vsub.f32 %v1219, %v1267
        %v1272 = vsub.f32 %v1224, %v1267
        %v1273 = vsub.f32 %v1227, %v1267
        %v1274 = vsub.f32 %v1232, %v1267
        %v1275 = vsub.f32 %v1235, %v1267
        %v1276 = vmul.f32 %v1268, 1.442695
        %v1277 = vpow.pop %v1276
        %v1278 = vmul.f32 %v1269, 1.442695
        %v1279 = vpow.pop %v1278
        %v1280 = vmul.f32 %v1270, 1.442695
        %v1281 = vpow.pop %v1280
        %v1282 = vmul.f32 %v1271, 1.442695
        %v1283 = vpow.pop %v1282
        %v1284 = vmul.f32 %v1272, 1.442695
        %v1285 = vpow.pop %v1284
        %v1286 = vmul.f32 %v1273, 1.442695
        %v1287 = vpow.pop %v1286
        %v1288 = vmul.f32 %v1274, 1.442695
        %v1289 = vpow.pop %v1288
        %v1290 = vmul.f32 %v1275, 1.442695
        %v1291 = vpow.pop %v1290
        %v1292 = vld [vmem:[#allocation4 + $0x2] sm:$0x1]
        %v1293 = vmul.f32 %v1263, %v1292
        %v1294 = vsel %vm767, %v1277, 0.0
        %v1295 = vsel %vm767, %v1279, 0.0
        %v1296 = vadd.f32 %v1294, %v1295
        %v1297 = vsel %vm767, %v1281, 0.0
        %v1298 = vadd.f32 %v1296, %v1297
        %v1299 = vsel %vm767, %v1283, 0.0
        %v1300 = vadd.f32 %v1298, %v1299
        %v1301 = vsel %vm767, %v1285, 0.0
        %v1302 = vadd.f32 %v1300, %v1301
        %v1303 = vsel %vm767, %v1287, 0.0
        %v1304 = vadd.f32 %v1302, %v1303
        %v1305 = vsel %vm767, %v1289, 0.0
        %v1306 = vadd.f32 %v1304, %v1305
        %v1307 = vsel %vm767, %v1291, 0.0
        %v1308 = vadd.f32 %v1306, %v1307
        %v1309 = vrot.slane %v1308, 4
        %v1310 = vadd.f32 %v1308, %v1309
        %v1311 = vrot.slane %v1310, 2
        %v1312 = vadd.f32 %v1310, %v1311
        %v1313 = vrot.slane %v1312, 1
        %v1314 = vadd.f32 %v1312, %v1313
        %v1315 = vadd.f32 %v1293, %v1314
        %1316 = vst.msk [vmem:[#allocation4 + $0x2] sm:$0x1] %vm845, %v1315
        %v1317 = vpack.c.bf16 %v1279, %v1277
        %v1318 = vpack.c.bf16 %v1283, %v1281
        %v1319 = vpack.c.bf16 %v1287, %v1285
        %v1320 = vpack.c.bf16 %v1291, %v1289
        %v1322 = vsel %vm767, %v1141, 0
        %1324 = vmatprep.subr.bf16.mxu0 0
        %1325 = vmatpush1.bf16.msra.mxu0 0
        %1326 = vmatprep.subr.bf16.mxu0 0
        %1327 = vmatpush1.bf16.msra.mxu0 0
        %1328 = vmatprep.subr.bf16.mxu0 0
        %1329 = vmatpush1.bf16.msra.mxu0 0
        %1330 = vmatprep.subr.bf16.mxu0 0
        %1331 = vmatpush1.bf16.msra.mxu0 0
        %1332 = vmatprep.subr.bf16.mxu0 0
        %1333 = vmatpush1.bf16.msra.mxu0 %v1320
        %1334 = vmatprep.subr.bf16.mxu0 0
        %1335 = vmatpush1.bf16.msra.mxu0 %v1319
        %1336 = vmatprep.subr.bf16.mxu0 0
        %1337 = vmatpush1.bf16.msra.mxu0 %v1318
        %1338 = vmatprep.subr.bf16.mxu0 0
        %1339 = vmatpush1.bf16.msra.mxu0 %v1317
        %1340 = vmatprep.subr.bf16.mxu0 0
        %1341 = vmatpush2.bf16.msra.mxu0 0
        %1342 = vmatprep.subr.bf16.mxu0 0
        %1343 = vmatpush2.bf16.msra.mxu0 0
        %1344 = vmatprep.subr.bf16.mxu0 0
        %1345 = vmatpush2.bf16.msra.mxu0 0
        %1346 = vmatprep.subr.bf16.mxu0 0
        %1347 = vmatpush2.bf16.msra.mxu0 0
        %1348 = vmatprep.subr.bf16.mxu0 0
        %1349 = vmatpush2.bf16.msra.mxu0 0
        %1350 = vmatprep.subr.bf16.mxu0 0
        %1351 = vmatpush2.bf16.msra.mxu0 0
        %1352 = vmatprep.subr.bf16.mxu0 0
        %1353 = vmatpush2.bf16.msra.mxu0 0
        %1354 = vmatprep.subr.bf16.mxu0 0
        %1355 = vmatpush2.bf16.msra.mxu0 0
        %1356 = vmatprep.mubr.bf16.mxu0 0
        %1357 = vmatmul.mubr.bf16.gmra.mxu0 %v1322
        %v1358 = vpop.f32.mrf.mxu0
        %v1359 = vadd.f32 0.0, %v1358
        %v1360 = vpop.f32.mrf.mxu0
        %v1361 = vpop.f32.mrf.mxu0
        %v1362 = vpop.f32.mrf.mxu0
        %1363 = vdwg.mxu0
        %v1364 = vld [vmem:[#allocation5 + $0x10] sm:$0xff]
        %v1365 = vlaneseq
        %v1366 = vshrl.u32 %v1365, 7
        %v1367 = vsub.s32 0, %v1366
        %v1368 = vrot.slane %v1263, %v1367
        %v1369 = vmul.f32 %v1368, %v1364
        %v1370 = vadd.f32 %v1369, %v1359
        %1371 = vst.msk [vmem:[#allocation5 + $0x10] sm:$0xff] %vm767, %v1370
        %1372 = vst.msk [vmem:[#allocation3 + $0x2] sm:$0x1] %vm845, %v1260
        %v1373 = vld [vmem:[#allocation2 + $0x18] sm:$0xff]
        %v1374 = vpack.c.bf16 %v1373, %v1373
        %v1375 = vpack.c.bf16 %v645, %v645
        %v1376 = vpack.c.bf16 %v661, %v661
        %1377 = vxpose.xlu0.c.b16.start [1/8] %v1375, 128
        %1378 = vxpose.xlu0.c.b16.cont [2/8] 0, 128
        %1379 = vxpose.xlu0.c.b16.cont [3/8] 0, 128
        %1380 = vxpose.xlu0.c.b16.cont [4/8] 0, 128
        %1381 = vxpose.xlu0.c.b16.cont [5/8] 0, 128
        %1382 = vxpose.xlu0.c.b16.cont [6/8] 0, 128
        %1383 = vxpose.xlu0.c.b16.cont [7/8] 0, 128
        %1384 = vxpose.xlu0.c.b16.end [8/8] 0, 128
        %v1385 = vpop.trf.xlu0
        %v1386 = vpop.trf.xlu0
        %v1387 = vpop.trf.xlu0
        %v1388 = vpop.trf.xlu0
        %v1389 = vpop.trf.xlu0
        %v1390 = vpop.trf.xlu0
        %v1391 = vpop.trf.xlu0
        %v1392 = vpop.trf.xlu0
        %v1394 = vsel %vm684, %v1385, 0
        %v1397 = vsel %vm684, %v1386, 0
        %v1400 = vsel %vm684, %v1387, 0
        %v1403 = vsel %vm684, %v1388, 0
        %v1406 = vsel %vm697, %v1374, 0
        %1408 = vmatprep.subr.bf16.mxu0 0
        %1409 = vmatpush1.bf16.msra.mxu0 0
        %1410 = vmatprep.subr.bf16.mxu0 0
        %1411 = vmatpush1.bf16.msra.mxu0 0
        %1412 = vmatprep.subr.bf16.mxu0 0
        %1413 = vmatpush1.bf16.msra.mxu0 0
        %1414 = vmatprep.subr.bf16.mxu0 0
        %1415 = vmatpush1.bf16.msra.mxu0 0
        %1416 = vmatprep.subr.bf16.mxu0 0
        %1417 = vmatpush1.bf16.msra.mxu0 0
        %1418 = vmatprep.subr.bf16.mxu0 0
        %1419 = vmatpush1.bf16.msra.mxu0 0
        %1420 = vmatprep.subr.bf16.mxu0 0
        %1421 = vmatpush1.bf16.msra.mxu0 0
        %1422 = vmatprep.subr.bf16.mxu0 0
        %1423 = vmatpush1.bf16.msra.mxu0 %v1406
        %1424 = vmatprep.subr.bf16.mxu0 0
        %1425 = vmatpush2.bf16.msra.mxu0 0
        %1426 = vmatprep.subr.bf16.mxu0 0
        %1427 = vmatpush2.bf16.msra.mxu0 0
        %1428 = vmatprep.subr.bf16.mxu0 0
        %1429 = vmatpush2.bf16.msra.mxu0 0
        %1430 = vmatprep.subr.bf16.mxu0 0
        %1431 = vmatpush2.bf16.msra.mxu0 0
        %1432 = vmatprep.subr.bf16.mxu0 0
        %1433 = vmatpush2.bf16.msra.mxu0 0
        %1434 = vmatprep.subr.bf16.mxu0 0
        %1435 = vmatpush2.bf16.msra.mxu0 0
        %1436 = vmatprep.subr.bf16.mxu0 0
        %1437 = vmatpush2.bf16.msra.mxu0 0
        %1438 = vmatprep.subr.bf16.mxu0 0
        %1439 = vmatpush2.bf16.msra.mxu0 0
        %1440 = vmatprep.mubr.bf16.mxu0 0
        %1441 = vmatmul.mubr.bf16.gmra.mxu0 %v1394
        %v1442 = vpop.f32.mrf.mxu0
        %v1443 = vadd.f32 0.0, %v1442
        %v1444 = vpop.f32.mrf.mxu0
        %v1445 = vpop.f32.mrf.mxu0
        %v1446 = vadd.f32 0.0, %v1445
        %v1447 = vpop.f32.mrf.mxu0
        %1448 = vmatprep.mubr.bf16.mxu0 0
        %1449 = vmatmul.mubr.bf16.gmra.mxu0 %v1397
        %v1450 = vpop.f32.mrf.mxu0
        %v1451 = vadd.f32 0.0, %v1450
        %v1452 = vpop.f32.mrf.mxu0
        %v1453 = vpop.f32.mrf.mxu0
        %v1454 = vadd.f32 0.0, %v1453
        %v1455 = vpop.f32.mrf.mxu0
        %1456 = vmatprep.mubr.bf16.mxu0 0
        %1457 = vmatmul.mubr.bf16.gmra.mxu0 %v1400
        %v1458 = vpop.f32.mrf.mxu0
        %v1459 = vadd.f32 0.0, %v1458
        %v1460 = vpop.f32.mrf.mxu0
        %v1461 = vpop.f32.mrf.mxu0
        %v1462 = vadd.f32 0.0, %v1461
        %v1463 = vpop.f32.mrf.mxu0
        %1464 = vmatprep.mubr.bf16.mxu0 0
        %1465 = vmatmul.mubr.bf16.gmra.mxu0 %v1403
        %v1466 = vpop.f32.mrf.mxu0
        %v1467 = vadd.f32 0.0, %v1466
        %v1468 = vpop.f32.mrf.mxu0
        %v1469 = vpop.f32.mrf.mxu0
        %v1470 = vadd.f32 0.0, %v1469
        %v1471 = vpop.f32.mrf.mxu0
        %1472 = vdwg.mxu0
        %v1473 = vld [vmem:[#allocation3 + $0x3] sm:$0x1]
        %v1474 = vsel %vm767, %v1443, -inf
        %v1475 = vsel %vm767, %v1446, -inf
        %v1476 = vsel %vm767, %v1451, -inf
        %v1477 = vsel %vm767, %v1454, -inf
        %v1478 = vsel %vm767, %v1459, -inf
        %v1479 = vmax.f32 %v1474, %v1478
        %v1480 = vsel %vm767, %v1462, -inf
        %v1481 = vmax.f32 %v1475, %v1480
        %v1482 = vsel %vm767, %v1467, -inf
        %v1483 = vmax.f32 %v1476, %v1482
        %v1484 = vsel %vm767, %v1470, -inf
        %v1485 = vmax.f32 %v1477, %v1484
        %v1486 = vmax.f32 %v1479, %v1481
        %v1487 = vmax.f32 %v1483, %v1485
        %v1488 = vmax.f32 %v1486, %v1487
        %v1489 = vrot.slane %v1488, 4
        %v1490 = vmax.f32 %v1488, %v1489
        %v1491 = vrot.slane %v1490, 2
        %v1492 = vmax.f32 %v1490, %v1491
        %v1493 = vrot.slane %v1492, 1
        %v1494 = vmax.f32 %v1492, %v1493
        %v1495 = vmax.f32 %v1473, %v1494
        %v1496 = vsub.f32 %v1473, %v1495
        %v1497 = vmul.f32 %v1496, 1.442695
        %v1498 = vpow.pop %v1497
        %v1499 = vlaneseq
        %v1500 = vshrl.u32 %v1499, 7
        %v1501 = vsub.s32 0, %v1500
        %v1502 = vrot.slane %v1495, %v1501
        %v1503 = vsub.f32 %v1443, %v1502
        %v1504 = vsub.f32 %v1446, %v1502
        %v1505 = vsub.f32 %v1451, %v1502
        %v1506 = vsub.f32 %v1454, %v1502
        %v1507 = vsub.f32 %v1459, %v1502
        %v1508 = vsub.f32 %v1462, %v1502
        %v1509 = vsub.f32 %v1467, %v1502
        %v1510 = vsub.f32 %v1470, %v1502
        %v1511 = vmul.f32 %v1503, 1.442695
        %v1512 = vpow.pop %v1511
        %v1513 = vmul.f32 %v1504, 1.442695
        %v1514 = vpow.pop %v1513
        %v1515 = vmul.f32 %v1505, 1.442695
        %v1516 = vpow.pop %v1515
        %v1517 = vmul.f32 %v1506, 1.442695
        %v1518 = vpow.pop %v1517
        %v1519 = vmul.f32 %v1507, 1.442695
        %v1520 = vpow.pop %v1519
        %v1521 = vmul.f32 %v1508, 1.442695
        %v1522 = vpow.pop %v1521
        %v1523 = vmul.f32 %v1509, 1.442695
        %v1524 = vpow.pop %v1523
        %v1525 = vmul.f32 %v1510, 1.442695
        %v1526 = vpow.pop %v1525
        %v1527 = vld [vmem:[#allocation4 + $0x3] sm:$0x1]
        %v1528 = vmul.f32 %v1498, %v1527
        %v1529 = vsel %vm767, %v1512, 0.0
        %v1530 = vsel %vm767, %v1514, 0.0
        %v1531 = vadd.f32 %v1529, %v1530
        %v1532 = vsel %vm767, %v1516, 0.0
        %v1533 = vadd.f32 %v1531, %v1532
        %v1534 = vsel %vm767, %v1518, 0.0
        %v1535 = vadd.f32 %v1533, %v1534
        %v1536 = vsel %vm767, %v1520, 0.0
        %v1537 = vadd.f32 %v1535, %v1536
        %v1538 = vsel %vm767, %v1522, 0.0
        %v1539 = vadd.f32 %v1537, %v1538
        %v1540 = vsel %vm767, %v1524, 0.0
        %v1541 = vadd.f32 %v1539, %v1540
        %v1542 = vsel %vm767, %v1526, 0.0
        %v1543 = vadd.f32 %v1541, %v1542
        %v1544 = vrot.slane %v1543, 4
        %v1545 = vadd.f32 %v1543, %v1544
        %v1546 = vrot.slane %v1545, 2
        %v1547 = vadd.f32 %v1545, %v1546
        %v1548 = vrot.slane %v1547, 1
        %v1549 = vadd.f32 %v1547, %v1548
        %v1550 = vadd.f32 %v1528, %v1549
        %1551 = vst.msk [vmem:[#allocation4 + $0x3] sm:$0x1] %vm845, %v1550
        %v1552 = vpack.c.bf16 %v1514, %v1512
        %v1553 = vpack.c.bf16 %v1518, %v1516
        %v1554 = vpack.c.bf16 %v1522, %v1520
        %v1555 = vpack.c.bf16 %v1526, %v1524
        %v1557 = vsel %vm767, %v1376, 0
        %1559 = vmatprep.subr.bf16.mxu0 0
        %1560 = vmatpush1.bf16.msra.mxu0 0
        %1561 = vmatprep.subr.bf16.mxu0 0
        %1562 = vmatpush1.bf16.msra.mxu0 0
        %1563 = vmatprep.subr.bf16.mxu0 0
        %1564 = vmatpush1.bf16.msra.mxu0 0
        %1565 = vmatprep.subr.bf16.mxu0 0
        %1566 = vmatpush1.bf16.msra.mxu0 0
        %1567 = vmatprep.subr.bf16.mxu0 0
        %1568 = vmatpush1.bf16.msra.mxu0 %v1555
        %1569 = vmatprep.subr.bf16.mxu0 0
        %1570 = vmatpush1.bf16.msra.mxu0 %v1554
        %1571 = vmatprep.subr.bf16.mxu0 0
        %1572 = vmatpush1.bf16.msra.mxu0 %v1553
        %1573 = vmatprep.subr.bf16.mxu0 0
        %1574 = vmatpush1.bf16.msra.mxu0 %v1552
        %1575 = vmatprep.subr.bf16.mxu0 0
        %1576 = vmatpush2.bf16.msra.mxu0 0
        %1577 = vmatprep.subr.bf16.mxu0 0
        %1578 = vmatpush2.bf16.msra.mxu0 0
        %1579 = vmatprep.subr.bf16.mxu0 0
        %1580 = vmatpush2.bf16.msra.mxu0 0
        %1581 = vmatprep.subr.bf16.mxu0 0
        %1582 = vmatpush2.bf16.msra.mxu0 0
        %1583 = vmatprep.subr.bf16.mxu0 0
        %1584 = vmatpush2.bf16.msra.mxu0 0
        %1585 = vmatprep.subr.bf16.mxu0 0
        %1586 = vmatpush2.bf16.msra.mxu0 0
        %1587 = vmatprep.subr.bf16.mxu0 0
        %1588 = vmatpush2.bf16.msra.mxu0 0
        %1589 = vmatprep.subr.bf16.mxu0 0
        %1590 = vmatpush2.bf16.msra.mxu0 0
        %1591 = vmatprep.mubr.bf16.mxu0 0
        %1592 = vmatmul.mubr.bf16.gmra.mxu0 %v1557
        %v1593 = vpop.f32.mrf.mxu0
        %v1594 = vadd.f32 0.0, %v1593
        %v1595 = vpop.f32.mrf.mxu0
        %v1596 = vpop.f32.mrf.mxu0
        %v1597 = vpop.f32.mrf.mxu0
        %1598 = vdwg.mxu0
        %v1599 = vld [vmem:[#allocation5 + $0x18] sm:$0xff]
        %v1600 = vlaneseq
        %v1601 = vshrl.u32 %v1600, 7
        %v1602 = vsub.s32 0, %v1601
        %v1603 = vrot.slane %v1498, %v1602
        %v1604 = vmul.f32 %v1603, %v1599
        %v1605 = vadd.f32 %v1604, %v1594
        %1606 = vst.msk [vmem:[#allocation5 + $0x18] sm:$0xff] %vm767, %v1605
        %1607 = vst.msk [vmem:[#allocation3 + $0x3] sm:$0x1] %vm845, %v1495
        // Predicated region
        $region57: #{tpu_custom_call.1} parent=51 // pred_check
          %p1608 = pneg %p368
        $region58: #{tpu_custom_call.1} parent=51 // pred_check_branch
          %1610 = sbr.rel (%p1608) target = $region60
        $region59: #{tpu_custom_call.1} parent=51 // pred_region
          %v1611 = vld [vmem:[#allocation4] sm:$0x1]
          %v1612 = vrcp.pop %v1611
          %v1613 = vmul.f32 %v1611, %v1612
          %v1614 = vsub.f32 2.0, %v1613
          %v1615 = vmul.f32 %v1612, %v1614
          %v1616 = vld [vmem:[#allocation5] sm:$0xff]
          %v1617 = vlaneseq
          %v1618 = vshrl.u32 %v1617, 7
          %v1619 = vsub.s32 0, %v1618
          %v1620 = vrot.slane %v1615, %v1619
          %v1621 = vmul.f32 %v1616, %v1620
          %1622 = vst.msk [vmem:[#allocation5] sm:$0xff] %vm767, %v1621
          %v1623 = vld [vmem:[#allocation4 + $0x1] sm:$0x1]
          %v1624 = vrcp.pop %v1623
          %v1625 = vmul.f32 %v1623, %v1624
          %v1626 = vsub.f32 2.0, %v1625
          %v1627 = vmul.f32 %v1624, %v1626
          %v1628 = vld [vmem:[#allocation5 + $0x8] sm:$0xff]
          %v1629 = vlaneseq
          %v1630 = vshrl.u32 %v1629, 7
          %v1631 = vsub.s32 0, %v1630
          %v1632 = vrot.slane %v1627, %v1631
          %v1633 = vmul.f32 %v1628, %v1632
          %1634 = vst.msk [vmem:[#allocation5 + $0x8] sm:$0xff] %vm767, %v1633
          %v1635 = vld [vmem:[#allocation4 + $0x2] sm:$0x1]
          %v1636 = vrcp.pop %v1635
          %v1637 = vmul.f32 %v1635, %v1636
          %v1638 = vsub.f32 2.0, %v1637
          %v1639 = vmul.f32 %v1636, %v1638
          %v1640 = vld [vmem:[#allocation5 + $0x10] sm:$0xff]
          %v1641 = vlaneseq
          %v1642 = vshrl.u32 %v1641, 7
          %v1643 = vsub.s32 0, %v1642
          %v1644 = vrot.slane %v1639, %v1643
          %v1645 = vmul.f32 %v1640, %v1644
          %1646 = vst.msk [vmem:[#allocation5 + $0x10] sm:$0xff] %vm767, %v1645
          %v1647 = vld [vmem:[#allocation4 + $0x3] sm:$0x1]
          %v1648 = vrcp.pop %v1647
          %v1649 = vmul.f32 %v1647, %v1648
          %v1650 = vsub.f32 2.0, %v1649
          %v1651 = vmul.f32 %v1648, %v1650
          %v1652 = vld [vmem:[#allocation5 + $0x18] sm:$0xff]
          %v1653 = vlaneseq
          %v1654 = vshrl.u32 %v1653, 7
          %v1655 = vsub.s32 0, %v1654
          %v1656 = vrot.slane %v1651, %v1655
          %v1657 = vmul.f32 %v1652, %v1656
          %1658 = vst.msk [vmem:[#allocation5 + $0x18] sm:$0xff] %vm767, %v1657
          %v1659 = vld [vmem:[#allocation5] sm:$0xff]
          %v1660 = vld [vmem:[#allocation5 + $0x8] sm:$0xff]
          %v1661 = vld [vmem:[#allocation5 + $0x10] sm:$0xff]
          %v1662 = vld [vmem:[#allocation5 + $0x18] sm:$0xff]
          %v1663 = vpack.c.bf16 %v1660, %v1659
          %v1664 = vpack.c.bf16 %v1662, %v1661
          %v1665 = vld [vmem:[%s6] sm:$0xf]
          %v1666 = vld [vmem:[%s6 + $0x4] sm:$0xf]
          %v1667 = vld [vmem:[%s6 + $0x8] sm:$0xf]
          %v1668 = vld [vmem:[%s6 + $0xc] sm:$0xf]
          %v1669 = vld [vmem:[%s7] sm:$0xff]
          %v1670 = vld [vmem:[%s7 + $0x8] sm:$0xff]
          %v1671 = vld [vmem:[%s7 + $0x10] sm:$0xff]
          %v1672 = vld [vmem:[%s7 + $0x18] sm:$0xff]
          %1674 = vset.pattern.permute.xlu0 0
          %1675 = vperm.xlu0 %1674, %v1669
          %v1676 = vpop.permute.xlu0 %1675
          %1679 = vset.pattern.permute.xlu0 0
          %1680 = vperm.xlu0 %1679, %v1670
          %v1681 = vpop.permute.xlu0 %1680
          %1684 = vset.pattern.permute.xlu0 0
          %1685 = vperm.xlu0 %1684, %v1671
          %v1686 = vpop.permute.xlu0 %1685
          %1689 = vset.pattern.permute.xlu0 0
          %1690 = vperm.xlu0 %1689, %v1672
          %v1691 = vpop.permute.xlu0 %1690
          %v1697 = vunpack.c.l.b16 %v1665
          %v1698 = vunpack.c.l.b16 %v1666
          %v1699 = vunpack.c.l.b16 %v1667
          %v1700 = vunpack.c.l.b16 %v1668
          %v1701 = vpack.c.b16 %v1698, %v1697
          %v1702 = vpack.c.b16 %v1700, %v1699
          %v1704 = vsel %vm586, %v1701, 0
          %v1707 = vsel %vm586, %v1702, 0
          %1709 = vmatprep.subr.bf16.mxu0 0
          %1710 = vmatpush1.bf16.msra.mxu0 0
          %1711 = vmatprep.subr.bf16.mxu0 0
          %1712 = vmatpush1.bf16.msra.mxu0 0
          %1713 = vmatprep.subr.bf16.mxu0 0
          %1714 = vmatpush1.bf16.msra.mxu0 0
          %1715 = vmatprep.subr.bf16.mxu0 0
          %1716 = vmatpush1.bf16.msra.mxu0 0
          %1717 = vmatprep.subr.bf16.mxu0 0
          %1718 = vmatpush1.bf16.msra.mxu0 0
          %1719 = vmatprep.subr.bf16.mxu0 0
          %1720 = vmatpush1.bf16.msra.mxu0 0
          %1721 = vmatprep.subr.bf16.mxu0 0
          %1722 = vmatpush1.bf16.msra.mxu0 %v1664
          %1723 = vmatprep.subr.bf16.mxu0 0
          %1724 = vmatpush1.bf16.msra.mxu0 %v1663
          %1725 = vmatprep.subr.bf16.mxu0 0
          %1726 = vmatpush2.bf16.msra.mxu0 0
          %1727 = vmatprep.subr.bf16.mxu0 0
          %1728 = vmatpush2.bf16.msra.mxu0 0
          %1729 = vmatprep.subr.bf16.mxu0 0
          %1730 = vmatpush2.bf16.msra.mxu0 0
          %1731 = vmatprep.subr.bf16.mxu0 0
          %1732 = vmatpush2.bf16.msra.mxu0 0
          %1733 = vmatprep.subr.bf16.mxu0 0
          %1734 = vmatpush2.bf16.msra.mxu0 0
          %1735 = vmatprep.subr.bf16.mxu0 0
          %1736 = vmatpush2.bf16.msra.mxu0 0
          %1737 = vmatprep.subr.bf16.mxu0 0
          %1738 = vmatpush2.bf16.msra.mxu0 0
          %1739 = vmatprep.subr.bf16.mxu0 0
          %1740 = vmatpush2.bf16.msra.mxu0 0
          %1741 = vmatprep.mubr.bf16.mxu0 0
          %1742 = vmatmul.mubr.bf16.gmra.mxu0 %v1704
          %v1743 = vpop.f32.mrf.mxu0
          %v1744 = vadd.f32 %v1676, %v1743
          %v1745 = vpop.f32.mrf.mxu0
          %v1746 = vpop.f32.mrf.mxu0
          %v1747 = vadd.f32 %v1681, %v1746
          %v1748 = vpop.f32.mrf.mxu0
          %1749 = vmatprep.mubr.bf16.mxu0 0
          %1750 = vmatmul.mubr.bf16.gmra.mxu0 %v1707
          %v1751 = vpop.f32.mrf.mxu0
          %v1752 = vadd.f32 %v1686, %v1751
          %v1753 = vpop.f32.mrf.mxu0
          %v1754 = vpop.f32.mrf.mxu0
          %v1755 = vadd.f32 %v1691, %v1754
          %v1756 = vpop.f32.mrf.mxu0
          %1757 = vdwg.mxu0
          %1758 = vst.msk [vmem:[%s350] sm:$0xff] %vm767, %v1744
          %1759 = vst.msk [vmem:[%s350 + $0x8] sm:$0xff] %vm767, %v1747
          %1760 = vst.msk [vmem:[%s350 + $0x10] sm:$0xff] %vm767, %v1752
          %1761 = vst.msk [vmem:[%s350 + $0x18] sm:$0xff] %vm767, %v1755
        $region60: #{tpu_custom_call.1} parent=51 // pred_fallthru
          _
        %s1762 = sand.u32 %s233, 1
        %s1763 = scalar_lea.sflag [#allocation7], %s1762
        %s1764 = sand.u32 %s233, 1
        %s1765 = smul.addr %s1764, 32
        %s1766 = scalar_lea.vmem [#allocation6], %s1765
        // Predicated region
        $region61: #{tpu_custom_call.1} parent=51 // pred_check
          %p1767 = pneg %p243
        $region62: #{tpu_custom_call.1} parent=51 // pred_check_branch
          %1769 = sbr.rel (%p1767) target = $region64
        $region63: #{tpu_custom_call.1} parent=51 // pred_region
          %s1771 = ssub.s32 512, 512
          %1772 = vsyncadd %s1763, %s1771
          %s1773 = smul.addr %s27, 4
          %s1774 = sadd.s32 %s28, %s1773
          %s1775 = smul.addr %s1774, 128
          %s1776 = scalar_lea.hbm %s8, %s1775
          %s1777 = sshll.u32 %s1766, 4
          %s1778 = int_to_ptr.vmem [resolvable:$true] %s1777
          %1783 = dma.vmem_to_hbm [thread:$0]  %s1778, 512, %s1776, %s1763, 128, 128, 8
        $region64: #{tpu_custom_call.1} parent=51 // pred_fallthru
          _
      $region52: #{tpu_custom_call.1} parent=5 // pred_fallthru
        _
      %p1784 = scmp.le.s32.totalorder 2, %s17
      // Predicated region
      $region65: #{tpu_custom_call.1} parent=5 // pred_check
        %p1785 = pneg %p1784
      $region66: #{tpu_custom_call.1} parent=5 // pred_check_branch
        %1787 = sbr.rel (%p1785) target = $region68
      $region67: #{tpu_custom_call.1} parent=5 // pred_region
        %s1788 = ssub.s32 %s17, 2
        // Predicated region
        $region69: #{tpu_custom_call.1} parent=67 // pred_check
          %p1789 = pneg %p249
        $region70: #{tpu_custom_call.1} parent=67 // pred_check_branch
          %1791 = sbr.rel (%p1789) target = $region72
        $region71: #{tpu_custom_call.1} parent=67 // pred_region
          %s1792 = sand.u32 %s234, 1
          %s1793 = scalar_lea.sflag [#allocation7], %s1792
          %s1794 = sand.u32 %s234, 1
          %s1795 = smul.addr %s1794, 32
          %s1796 = scalar_lea.vmem [#allocation6], %s1795
          %1797 = dma.done %s1793, 512
        $region72: #{tpu_custom_call.1} parent=67 // pred_fallthru
          _
      $region68: #{tpu_custom_call.1} parent=5 // pred_fallthru
        _
    $region6: #{tpu_custom_call.1} parent=1 // loop_footer
      %s21 = sadd.s32 1, %s17
    $region7: #{tpu_custom_call.1} parent=1 // loop_footer_branch
      %16 = sbr.rel target = $region3
    $region8: #{tpu_custom_call.1} parent=1 // loop_exit
      _
    %1798 = vsyncpa [#allocation7], 1
    %s1799 = scalar_lea.sflag [#allocation7], 1
    %1800 = vsyncpa %s1799, 1

</llo_original>
